<compile_context>
chip_gen: v7x
topology: tpu7x:2x2x1
jax: 0.10.0
libtpu: 0.0.40
codegen_flags: <defaults>
</compile_context>

<pallas_src>
import functools

import jax
import jax.numpy as jnp
from jax.experimental import pallas as pl
from jax.experimental.pallas import tpu as pltpu

_INV_SQRT2 = 0.7071067811865476
_SQRT_2_OVER_PI = 0.7978845608028654


def _gelu_f32(y, approximate):
    if approximate:
        # tanh lowers to the EUP slot -> frees the VALU vs the erf polynomial.
        return 0.5 * y * (1.0 + jnp.tanh(_SQRT_2_OVER_PI * (y + 0.044715 * (y * y * y))))
    # exact erf GELU: matches torch/HF "gelu" semantics.
    return 0.5 * y * (1.0 + jax.lax.erf(y * _INV_SQRT2))


def _ffn1_resident_kernel(x_ref, w_ref, b_ref, o_ref, *,
                          operand_dtype, approximate_gelu, precision):
    # x_ref: (tm, H), w_ref: (H, I) resident, b_ref: (1, I), o_ref: (tm, I).
    x = x_ref[...]
    if x.dtype != operand_dtype:
        x = x.astype(operand_dtype)  # in-kernel cast, hidden under MXU work
    y = jnp.dot(x, w_ref[...], preferred_element_type=jnp.float32,
                precision=precision)
    y = y + b_ref[...].astype(jnp.float32)
    o_ref[...] = _gelu_f32(y, approximate_gelu).astype(o_ref.dtype)


def _ffn1_reduce_kernel(x_ref, w_ref, b_ref, o_ref, acc_ref, *,
                        operand_dtype, approximate_gelu, precision):
    # Fallback path (weight too large to keep resident): K-reduction grid axis
    # with an f32 VMEM accumulator; first step assigns (no zero-fill pass).
    k = pl.program_id(2)
    x = x_ref[...]
    if x.dtype != operand_dtype:
        x = x.astype(operand_dtype)
    part = jnp.dot(x, w_ref[...], preferred_element_type=jnp.float32,
                   precision=precision)

    @pl.when(k == 0)
    def _():
        acc_ref[...] = part

    @pl.when(k > 0)
    def _():
        acc_ref[...] += part

    @pl.when(k == pl.num_programs(2) - 1)
    def _():
        y = acc_ref[...] + b_ref[...].astype(jnp.float32)
        o_ref[...] = _gelu_f32(y, approximate_gelu).astype(o_ref.dtype)


def _pick_tile(dim, pref, align):
    """Largest multiple of `align` that divides `dim` and is <= pref, else dim."""
    if dim <= pref:
        return dim
    t = (pref // align) * align
    while t >= align:
        if dim % t == 0:
            return t
        t -= align
    return dim


def _vmem_limit(estimate_bytes):
    # Headroom over the estimate, clamped to a range valid on every generation
    # (v5e default scoped limit is 16 MiB; v7x physical VMEM is 64 MiB).
    return int(min(max(estimate_bytes * 5 // 4, 16 << 20), 60 << 20))


def bert_intermediate(hidden_states, weight, bias, *,
                      tile_m=256, tile_n=512, tile_k=512,
                      compute_dtype=None, approximate_gelu=False,
                      resident_weight_vmem_budget=40 << 20):
    """hidden_states: [B, S, H]; weight: [H, I]; bias: [I] -> [B, S, I].

    compute_dtype: optional matmul operand dtype (e.g. jnp.bfloat16). The
    recommended usage is to pre-cast `weight` ONCE at init and pass it here;
    the x tile is then cast inside the kernel. Accumulation and the bias/GELU
    epilogue are always f32.
    """
    B, S, H = hidden_states.shape
    H_w, I = weight.shape
    assert H == H_w, "weight must be [hidden, intermediate]"
    M = B * S
    out_dtype = hidden_states.dtype

    operand_dtype = jnp.dtype(compute_dtype) if compute_dtype is not None else weight.dtype
    if weight.dtype != operand_dtype:
        # NOTE: prefer casting the weight once at parameter-init time; this is
        # only a per-call fallback.
        weight = weight.astype(operand_dtype)

    x2d = hidden_states.reshape(M, H)
    b2d = bias.reshape(1, I).astype(jnp.float32)

    # f32 operands: force full-precision MXU so exact-erf GELU keeps strict
    # parity with the torch reference. bf16/fp8 operands use the native path.
    precision = (jax.lax.Precision.HIGHEST
                 if operand_dtype == jnp.dtype(jnp.float32) else None)

    op_bytes = jnp.dtype(operand_dtype).itemsize
    x_bytes = jnp.dtype(x2d.dtype).itemsize
    out_bytes = jnp.dtype(out_dtype).itemsize

    # ---- M tile: aligned divisor of M; keep >=2 parallel steps when possible
    # so both v7x TensorCores get work. -------------------------------------
    tm = _pick_tile(M, tile_m, 8)
    if M // tm < 2 and M >= 16 and M % 16 == 0:
        tm = M // 2

    # ---- Fast path: weight resident in VMEM, K axis collapsed. -------------
    resident_est = (2 * H * I * op_bytes           # weight (constant index -> single DMA)
                    + 2 * tm * H * x_bytes         # streamed x tiles (double-buffered)
                    + 2 * tm * I * out_bytes       # output tiles
                    + 2 * I * 4)                   # bias
    if resident_est <= resident_weight_vmem_budget:
        kernel = functools.partial(_ffn1_resident_kernel,
                                   operand_dtype=operand_dtype,
                                   approximate_gelu=approximate_gelu,
                                   precision=precision)
        out2d = pl.pallas_call(
            kernel,
            out_shape=jax.ShapeDtypeStruct((M, I), out_dtype),
            grid_spec=pltpu.PrefetchScalarGridSpec(
                num_scalar_prefetch=0,
                grid=(M // tm,),
                in_specs=[
                    pl.BlockSpec((tm, H), lambda i: (i, 0)),
                    pl.BlockSpec((H, I), lambda i: (0, 0)),   # weight stationary
                    pl.BlockSpec((1, I), lambda i: (0, 0)),
                ],
                out_specs=pl.BlockSpec((tm, I), lambda i: (i, 0)),
            ),
            compiler_params=pltpu.CompilerParams(
                dimension_semantics=("parallel",),
                vmem_limit_bytes=_vmem_limit(resident_est),
            ),
        )(x2d, weight, b2d)
        return out2d.reshape(B, S, I)

    # ---- Fallback: tiled (tm, tn, tk) with K-reduction grid axis last. -----
    tn = _pick_tile(I, tile_n, 128)
    tk = H if H <= tile_k else _pick_tile(H, tile_k, 128)
    grid = (M // tm, I // tn, H // tk)
    tiled_est = (2 * (tm * tk * x_bytes + tk * tn * op_bytes + tn * 4)
                 + 2 * tm * tn * out_bytes
                 + tm * tn * 4)
    kernel = functools.partial(_ffn1_reduce_kernel,
                               operand_dtype=operand_dtype,
                               approximate_gelu=approximate_gelu,
                               precision=precision)
    out2d = pl.pallas_call(
        kernel,
        out_shape=jax.ShapeDtypeStruct((M, I), out_dtype),
        grid_spec=pltpu.PrefetchScalarGridSpec(
            num_scalar_prefetch=0,
            grid=grid,
            in_specs=[
                pl.BlockSpec((tm, tk), lambda i, j, k: (i, k)),
                pl.BlockSpec((tk, tn), lambda i, j, k: (k, j)),
                pl.BlockSpec((1, tn), lambda i, j, k: (0, j)),
            ],
            out_specs=pl.BlockSpec((tm, tn), lambda i, j, k: (i, j)),
            scratch_shapes=[pltpu.VMEM((tm, tn), jnp.float32)],
        ),
        compiler_params=pltpu.CompilerParams(
            dimension_semantics=("parallel", "parallel", "arbitrary"),
            vmem_limit_bytes=_vmem_limit(tiled_est),
        ),
    )(x2d, weight, b2d)
    return out2d.reshape(B, S, I)


def reference(hidden_states, weight, bias, approximate=False):
    y = jnp.einsum("bsh,hi->bsi", hidden_states, weight,
                   precision=jax.lax.Precision.HIGHEST) + bias
    if approximate:
        return 0.5 * y * (1.0 + jnp.tanh(_SQRT_2_OVER_PI * (y + 0.044715 * y ** 3)))
    return 0.5 * y * (1.0 + jax.lax.erf(y * _INV_SQRT2))


if __name__ == "__main__":
    # config: hidden_size=128, intermediate_size=512, hidden_act="gelu"
    batch, seq, hidden, intermediate = 2, 8, 128, 512

    key = jax.random.PRNGKey(0)
    kx, kw, kb = jax.random.split(key, 3)
    x = jax.random.normal(kx, (batch, seq, hidden), dtype=jnp.float32)
    # deterministic synthetic parameters (not a checkpoint load)
    w = jax.random.normal(kw, (hidden, intermediate), dtype=jnp.float32) * 0.02
    b = jax.random.normal(kb, (intermediate,), dtype=jnp.float32) * 0.02

    ref_erf = reference(x, w, b, approximate=False)
    ref_tanh = reference(x, w, b, approximate=True)

    # 1) f32 path, exact-erf GELU: strict parity with torch defaults.
    out = jax.block_until_ready(bert_intermediate(x, w, b))
    assert out.shape == (batch, seq, intermediate)
    assert jnp.allclose(out, ref_erf, atol=1e-5, rtol=1e-5)

    # 2) bf16 operand path: weight pre-cast ONCE (as a parameter would be);
    #    x is cast inside the kernel; f32 accumulation + f32 epilogue.
    w_bf16 = w.astype(jnp.bfloat16)
    out_bf16 = jax.block_until_ready(bert_intermediate(x, w_bf16, b))
    assert out_bf16.shape == (batch, seq, intermediate)
    assert jnp.allclose(out_bf16, ref_erf, atol=5e-2, rtol=5e-2)

    # 3) Optional tanh-approx GELU (EUP path); compared against a tanh reference
    #    since it intentionally differs from exact-erf numerics.
    out_tanh = jax.block_until_ready(
        bert_intermediate(x, w, b, approximate_gelu=True)
    )
    assert jnp.allclose(out_tanh, ref_tanh, atol=1e-5, rtol=1e-5)

    print("KERNEL_OK")
</pallas_src>

<mosaic_0001>
module attributes {stable_mosaic.version = 11 : i64} {
  func.func @_ffn1_resident_kernel(%arg0: i32, %arg1: memref<8x128xf32, #tpu.memory_space<vmem>>, %arg2: memref<128x512xf32, #tpu.memory_space<vmem>>, %arg3: memref<1x512xf32, #tpu.memory_space<vmem>>, %arg4: memref<8x512xf32, #tpu.memory_space<vmem>>) attributes {dimension_semantics = [#tpu.dimension_semantics<parallel>], iteration_bounds = array<i64: 2>, scalar_prefetch = 0 : i64, scratch_operands = 0 : i64, tpu.core_type = #tpu.core_type<tc>, window_params = [{transform_indices = @transform_0, window_bounds = array<i64: 8, 128>}, {pipeline_mode = #tpu.pipeline_mode<synchronous>, transform_indices = @transform_1, window_bounds = array<i64: 128, 512>}, {pipeline_mode = #tpu.pipeline_mode<synchronous>, transform_indices = @transform_2, window_bounds = array<i64: 1, 512>}, {transform_indices = @transform_3, window_bounds = array<i64: 8, 512>}]} {
    %c0 = arith.constant 0 : index
    %c0_0 = arith.constant 0 : index
    %0 = vector.load %arg1[%c0, %c0_0] : memref<8x128xf32, #tpu.memory_space<vmem>>, vector<8x128xf32>
    %c0_1 = arith.constant 0 : index
    %c0_2 = arith.constant 0 : index
    %1 = vector.load %arg2[%c0_1, %c0_2] : memref<128x512xf32, #tpu.memory_space<vmem>>, vector<128x512xf32>
    %cst = arith.constant dense<0.000000e+00> : vector<8x512xf32>
    %2 = tpu.matmul %0, %1, %cst {dimension_numbers = #tpu.dot_dimension_numbers<[1], [0], [0], [1], [0, 0, 1, 1], [], []>, precision = #tpu.contract_precision<fp32>} : vector<8x128xf32>, vector<128x512xf32>, vector<8x512xf32> -> vector<8x512xf32>
    %c0_3 = arith.constant 0 : index
    %c0_4 = arith.constant 0 : index
    %3 = vector.load %arg3[%c0_3, %c0_4] : memref<1x512xf32, #tpu.memory_space<vmem>>, vector<1x512xf32>
    %4 = vector.broadcast %3 : vector<1x512xf32> to vector<8x512xf32>
    %5 = arith.addf %2, %4 : vector<8x512xf32>
    %cst_5 = arith.constant 5.000000e-01 : f32
    %6 = vector.broadcast %cst_5 : f32 to vector<8x512xf32>
    %7 = arith.mulf %6, %5 : vector<8x512xf32>
    %cst_6 = arith.constant 0.707106769 : f32
    %8 = vector.broadcast %cst_6 : f32 to vector<8x512xf32>
    %9 = arith.mulf %5, %8 : vector<8x512xf32>
    %10 = math.erf %9 : vector<8x512xf32>
    %cst_7 = arith.constant 1.000000e+00 : f32
    %11 = vector.broadcast %cst_7 : f32 to vector<8x512xf32>
    %12 = arith.addf %11, %10 : vector<8x512xf32>
    %13 = arith.mulf %7, %12 : vector<8x512xf32>
    %c0_8 = arith.constant 0 : index
    %c0_9 = arith.constant 0 : index
    %14 = vector.load %arg4[%c0_8, %c0_9] : memref<8x512xf32, #tpu.memory_space<vmem>>, vector<8x512xf32>
    tpu.vector_store %arg4[%c0_8, %c0_9], %13 {strides = array<i32>} : memref<8x512xf32, #tpu.memory_space<vmem>>, vector<8x512xf32>,
    return
  }
  func.func @transform_0(%arg0: i32) -> (i32, i32) {
    %c0_i32 = arith.constant 0 : i32
    %c0_i32_0 = arith.constant 0 : i32
    return %arg0, %c0_i32 : i32, i32
  }
  func.func @transform_1(%arg0: i32) -> (i32, i32) {
    %c0_i32 = arith.constant 0 : i32
    %c0_i32_0 = arith.constant 0 : i32
    %c0_i32_1 = arith.constant 0 : i32
    return %c0_i32, %c0_i32_0 : i32, i32
  }
  func.func @transform_2(%arg0: i32) -> (i32, i32) {
    %c0_i32 = arith.constant 0 : i32
    %c0_i32_0 = arith.constant 0 : i32
    %c0_i32_1 = arith.constant 0 : i32
    return %c0_i32, %c0_i32_0 : i32, i32
  }
  func.func @transform_3(%arg0: i32) -> (i32, i32) {
    %c0_i32 = arith.constant 0 : i32
    %c0_i32_0 = arith.constant 0 : i32
    return %arg0, %c0_i32 : i32, i32
  }
}

</mosaic_0001>

<llo_original>
// kernel: tpu_custom_call.1
$region0: #{tpu_custom_call.1}
  #allocation0 [shape = 'u32[]', space=smem, size = 0x4, offset = 0x4, fixed_abs, tag = 'smem constant byte address 0x4 - core index']
  #allocation1 [shape = 'u32[144,128]{1,0:T(1,128)}', space=vmem, size = 0x12000, scoped, tag = 'internal scratch']
  %s0 = inlined_call_operand.hbm [shape: f32[16,128], index: 0, kind: input, shape index: {}]
  %s1 = inlined_call_operand.hbm [shape: f32[128,512], index: 1, kind: input, shape index: {}]
  %s2 = inlined_call_operand.vmem [shape: f32[1,512], index: 2, kind: input, shape index: {}]
  %s3 = inlined_call_operand.hbm [shape: f32[16,512], index: 3, kind: output, shape index: {}]
  %s4 = sld [smem:[#allocation0]]
  $region53: #{tpu_custom_call.1} parent=0
    _
  %s6 = ssub.s32 1, %s4
  %s7 = scalar_select 0, %s6, %s4
  $region1: #{tpu_custom_call.1} parent=0
    #allocation2 [shape = 'u8[8192]{0}', space=vmem, size = 0x2000, scoped, tag = 'input window, operand 0']
    #allocation3 [shape = 's32[2]{0}', space=sflag, size = 0x8, scoped, tag = 'scoped memory for tpu_custom_call.1']
    #allocation4 [shape = 's32[2]{0}', space=sflag, size = 0x8, scoped, tag = 'scoped memory for tpu_custom_call.1']
    #allocation5 [shape = 'u8[262144]{0}', space=vmem, size = 0x40000, scoped, tag = 'input window, operand 1, single buffered']
    #allocation6 [shape = 's32[1]{0}', space=sflag, size = 0x4, scoped, tag = 'scoped memory for tpu_custom_call.1']
    #allocation7 [shape = 'u8[32768]{0}', space=vmem, size = 0x8000, scoped, tag = 'output window, operand 0']
    %8 = vsyncpa [#allocation3], 0
    %s9 = scalar_lea.sflag [#allocation3], 1
    %10 = vsyncpa %s9, 0
    %11 = vsyncpa [#allocation6], 0
    %12 = vsyncpa [#allocation4], 0
    %s13 = scalar_lea.sflag [#allocation4], 1
    %14 = vsyncpa %s13, 0
    loop: start=0, step=1, limit=4
    $region2: #{tpu_custom_call.1} parent=1 // loop_pre_header
      _
    $region3: #{tpu_custom_call.1} parent=1 // loop_header
      %s16 = sphi 0, %s20
      %p17 = scmp.ge.s32.totalorder %s16, 4
      %s26 = sphi 0, %s28
      %s29 = sphi 0, %s26
      %s30 = sphi 0, %s29
      %s46 = sphi 0, %s30
      %s50 = sphi 0, %s50
      %s52 = sphi 0, %s50
      %s53 = sphi 0, %s52
      %s67 = sphi 0, %s53
      %s71 = sphi 0, %s71
      %s73 = sphi 0, %s71
      %s74 = sphi 0, %s73
      %s88 = sphi 0, %s74
      %s94 = sphi 0, %s96
      %s97 = sphi 0, %s94
      %s98 = sphi 0, %s97
      %s114 = sphi 0, %s98
    $region4: #{tpu_custom_call.1} parent=1 // loop_header_branch
      %19 = sbr.rel (%p17) target = $region8
    $region5: #{tpu_custom_call.1} parent=1 // loop_body
      %s21 = ssub.s32 %s16, 1
      %s22 = ssub.s32 %s16, 2
      %s23 = sadd.s32 %s16, 1
      %s24 = ssub.s32 %s16, %s23
      %p25 = scmp.eq.s32.totalorder %s24, 0
      %s27 = sadd.s32 %s26, 1
      %s28 = scalar_select %p25, %s26, %s27
      %p31 = pneg %p25
      %p32 = scmp.eq.s32.totalorder %s16, 1
      %p33 = por %p31, %p32
      %p34 = scmp.ne.s32.totalorder %s26, %s29
      %p35 = scmp.eq.s32.totalorder %s16, 0
      %p36 = por %p34, %p35
      %p37 = scmp.ne.s32.totalorder %s26, %s29
      %p38 = scmp.eq.s32.totalorder %s21, 1
      %p39 = por %p37, %p38
      %p40 = scmp.ne.s32.totalorder %s29, %s30
      %p41 = scmp.eq.s32.totalorder %s21, 0
      %p42 = por %p40, %p41
      %p43 = scmp.ne.s32.totalorder %s29, %s30
      %p44 = scmp.eq.s32.totalorder %s22, 1
      %p45 = por %p43, %p44
      %p47 = scmp.ne.s32.totalorder %s30, %s46
      %p48 = scmp.eq.s32.totalorder %s22, 0
      %p49 = por %p47, %p48
      %s51 = sadd.s32 %s50, 1
      %p54 = scmp.eq.s32.totalorder %s16, 1
      %p55 = scmp.ne.s32.totalorder %s50, %s52
      %p56 = scmp.eq.s32.totalorder %s16, 0
      %p57 = por %p55, %p56
      %p58 = scmp.ne.s32.totalorder %s50, %s52
      %p59 = scmp.eq.s32.totalorder %s21, 1
      %p60 = por %p58, %p59
      %p61 = scmp.ne.s32.totalorder %s52, %s53
      %p62 = scmp.eq.s32.totalorder %s21, 0
      %p63 = por %p61, %p62
      %p64 = scmp.ne.s32.totalorder %s52, %s53
      %p65 = scmp.eq.s32.totalorder %s22, 1
      %p66 = por %p64, %p65
      %p68 = scmp.ne.s32.totalorder %s53, %s67
      %p69 = scmp.eq.s32.totalorder %s22, 0
      %p70 = por %p68, %p69
      %s72 = sadd.s32 %s71, 1
      %p75 = scmp.eq.s32.totalorder %s16, 1
      %p76 = scmp.ne.s32.totalorder %s71, %s73
      %p77 = scmp.eq.s32.totalorder %s16, 0
      %p78 = por %p76, %p77
      %p79 = scmp.ne.s32.totalorder %s71, %s73
      %p80 = scmp.eq.s32.totalorder %s21, 1
      %p81 = por %p79, %p80
      %p82 = scmp.ne.s32.totalorder %s73, %s74
      %p83 = scmp.eq.s32.totalorder %s21, 0
      %p84 = por %p82, %p83
      %p85 = scmp.ne.s32.totalorder %s73, %s74
      %p86 = scmp.eq.s32.totalorder %s22, 1
      %p87 = por %p85, %p86
      %p89 = scmp.ne.s32.totalorder %s74, %s88
      %p90 = scmp.eq.s32.totalorder %s22, 0
      %p91 = por %p89, %p90
      %s92 = ssub.s32 %s16, %s23
      %p93 = scmp.eq.s32.totalorder %s92, 0
      %s95 = sadd.s32 %s94, 1
      %s96 = scalar_select %p93, %s94, %s95
      %p99 = pneg %p93
      %p100 = scmp.eq.s32.totalorder %s16, 1
      %p101 = por %p99, %p100
      %p102 = scmp.ne.s32.totalorder %s94, %s97
      %p103 = scmp.eq.s32.totalorder %s16, 0
      %p104 = por %p102, %p103
      %p105 = scmp.ne.s32.totalorder %s94, %s97
      %p106 = scmp.eq.s32.totalorder %s21, 1
      %p107 = por %p105, %p106
      %p108 = scmp.ne.s32.totalorder %s97, %s98
      %p109 = scmp.eq.s32.totalorder %s21, 0
      %p110 = por %p108, %p109
      %p111 = scmp.ne.s32.totalorder %s97, %s98
      %p112 = scmp.eq.s32.totalorder %s22, 1
      %p113 = por %p111, %p112
      %p115 = scmp.ne.s32.totalorder %s98, %s114
      %p116 = scmp.eq.s32.totalorder %s22, 0
      %p117 = por %p115, %p116
      %p118 = scmp.le.s32.totalorder 1, %s16
      %p119 = scmp.lt.s32.totalorder %s16, 3
      %p120 = pnand %p118, %p119
      %p121 = pneg %p120
      // Predicated region
      $region9: #{tpu_custom_call.1} parent=5 // pred_check
        _
      $region10: #{tpu_custom_call.1} parent=5 // pred_check_branch
        %123 = sbr.rel (%p120) target = $region12
      $region11: #{tpu_custom_call.1} parent=5 // pred_region
        %s124 = ssub.s32 %s16, 1
        // Predicated region
        $region13: #{tpu_custom_call.1} parent=11 // pred_check
          %p125 = pneg %p63
        $region14: #{tpu_custom_call.1} parent=11 // pred_check_branch
          %127 = sbr.rel (%p125) target = $region16
        $region15: #{tpu_custom_call.1} parent=11 // pred_region
          %s129 = ssub.s32 8192, 8192
          %130 = vsyncadd [#allocation6], %s129
          %s131 = sshll.u32 [#allocation5], 4
          %s132 = int_to_ptr.vmem [resolvable:$true] %s131
          %137 = dma.hbm_to_vmem [thread:$0]  %s1, 8192, %s132, [#allocation6], 512, 512, 32
        $region16: #{tpu_custom_call.1} parent=11 // pred_fallthru
          _
        // Predicated region
        $region17: #{tpu_custom_call.1} parent=11 // pred_check
          %p138 = pneg %p84
        $region18: #{tpu_custom_call.1} parent=11 // pred_check_branch
          %140 = sbr.rel (%p138) target = $region20
        $region19: #{tpu_custom_call.1} parent=11 // pred_region
          _
        $region20: #{tpu_custom_call.1} parent=11 // pred_fallthru
          _
      $region12: #{tpu_custom_call.1} parent=5 // pred_fallthru
        _
      %p141 = scmp.lt.s32.totalorder %s16, 2
      // Predicated region
      $region21: #{tpu_custom_call.1} parent=5 // pred_check
        %p142 = pneg %p141
      $region22: #{tpu_custom_call.1} parent=5 // pred_check_branch
        %144 = sbr.rel (%p142) target = $region24
      $region23: #{tpu_custom_call.1} parent=5 // pred_region
        // Predicated region
        $region25: #{tpu_custom_call.1} parent=23 // pred_check
          %p145 = pneg %p36
        $region26: #{tpu_custom_call.1} parent=23 // pred_check_branch
          %147 = sbr.rel (%p145) target = $region28
        $region27: #{tpu_custom_call.1} parent=23 // pred_region
          %s148 = sand.u32 %s26, 1
          %s149 = scalar_lea.sflag [#allocation3], %s148
          %s150 = sand.u32 %s26, 1
          %s151 = smul.addr %s150, 8
          %s152 = scalar_lea.vmem [#allocation2], %s151
          %s154 = ssub.s32 128, 128
          %155 = vsyncadd %s149, %s154
          %s156 = smul.addr %s16, 128
          %s157 = scalar_lea.hbm %s0, %s156
          %s159 = sshll.u32 %s152, 4
          %s160 = int_to_ptr.vmem [resolvable:$true] %s159
          %162 = dma.hbm_to_vmem [thread:$0]  %s157, 128, %s160, %s149
        $region28: #{tpu_custom_call.1} parent=23 // pred_fallthru
          _
      $region24: #{tpu_custom_call.1} parent=5 // pred_fallthru
        _
      %p163 = scmp.le.s32.totalorder 1, %s16
      %p164 = scmp.lt.s32.totalorder %s16, 3
      %p165 = pnand %p163, %p164
      %p166 = pneg %p165
      // Predicated region
      $region29: #{tpu_custom_call.1} parent=5 // pred_check
        _
      $region30: #{tpu_custom_call.1} parent=5 // pred_check_branch
        %168 = sbr.rel (%p165) target = $region32
      $region31: #{tpu_custom_call.1} parent=5 // pred_region
        %s169 = ssub.s32 %s16, 1
        %s170 = sand.u32 %s29, 1
        %s171 = scalar_lea.sflag [#allocation3], %s170
        %s172 = sand.u32 %s29, 1
        %s173 = smul.addr %s172, 8
        %s174 = scalar_lea.vmem [#allocation2], %s173
        // Predicated region
        $region33: #{tpu_custom_call.1} parent=31 // pred_check
          %p175 = pneg %p42
        $region34: #{tpu_custom_call.1} parent=31 // pred_check_branch
          %177 = sbr.rel (%p175) target = $region36
        $region35: #{tpu_custom_call.1} parent=31 // pred_region
          %178 = dma.done %s171, 128
        $region36: #{tpu_custom_call.1} parent=31 // pred_fallthru
          _
        // Predicated region
        $region37: #{tpu_custom_call.1} parent=31 // pred_check
          %p179 = pneg %p63
        $region38: #{tpu_custom_call.1} parent=31 // pred_check_branch
          %181 = sbr.rel (%p179) target = $region40
        $region39: #{tpu_custom_call.1} parent=31 // pred_region
          %182 = dma.done [#allocation6], 8192
        $region40: #{tpu_custom_call.1} parent=31 // pred_fallthru
          _
        %s183 = sand.u32 %s29, 1
        %s184 = scalar_lea.sflag [#allocation3], %s183
        %s185 = sand.u32 %s29, 1
        %s186 = smul.addr %s185, 8
        %s187 = scalar_lea.vmem [#allocation2], %s186
        %p188 = pneg %p42
        %p189 = pneg %p39
        %p190 = pneg %p63
        %p191 = pneg %p60
        %p192 = pneg %p84
        %p193 = pneg %p81
        %p194 = pneg %p110
        %p195 = pneg %p107
        %s196 = sand.u32 %s97, 1
        %s197 = scalar_lea.sflag [#allocation4], %s196
        %s198 = sand.u32 %s97, 1
        %s199 = smul.addr %s198, 32
        %s200 = scalar_lea.vmem [#allocation7], %s199
        %v201 = vld [vmem:[%s174] sm:$0xff]
        %v202 = vld [vmem:[#allocation5] sm:$0xff]
        %v203 = vld [vmem:[#allocation5 + $0x8] sm:$0xff]
        %v204 = vld [vmem:[#allocation5 + $0x10] sm:$0xff]
        %v205 = vld [vmem:[#allocation5 + $0x18] sm:$0xff]
        %v206 = vld [vmem:[#allocation5 + $0x20] sm:$0xff]
        %v207 = vld [vmem:[#allocation5 + $0x28] sm:$0xff]
        %v208 = vld [vmem:[#allocation5 + $0x30] sm:$0xff]
        %v209 = vld [vmem:[#allocation5 + $0x38] sm:$0xff]
        %v210 = vld [vmem:[#allocation5 + $0x40] sm:$0xff]
        %v211 = vld [vmem:[#allocation5 + $0x48] sm:$0xff]
        %v212 = vld [vmem:[#allocation5 + $0x50] sm:$0xff]
        %v213 = vld [vmem:[#allocation5 + $0x58] sm:$0xff]
        %v214 = vld [vmem:[#allocation5 + $0x60] sm:$0xff]
        %v215 = vld [vmem:[#allocation5 + $0x68] sm:$0xff]
        %v216 = vld [vmem:[#allocation5 + $0x70] sm:$0xff]
        %v217 = vld [vmem:[#allocation5 + $0x78] sm:$0xff]
        %v218 = vld [vmem:[#allocation5 + $0x80] sm:$0xff]
        %v219 = vld [vmem:[#allocation5 + $0x88] sm:$0xff]
        %v220 = vld [vmem:[#allocation5 + $0x90] sm:$0xff]
        %v221 = vld [vmem:[#allocation5 + $0x98] sm:$0xff]
        %v222 = vld [vmem:[#allocation5 + $0xa0] sm:$0xff]
        %v223 = vld [vmem:[#allocation5 + $0xa8] sm:$0xff]
        %v224 = vld [vmem:[#allocation5 + $0xb0] sm:$0xff]
        %v225 = vld [vmem:[#allocation5 + $0xb8] sm:$0xff]
        %v226 = vld [vmem:[#allocation5 + $0xc0] sm:$0xff]
        %v227 = vld [vmem:[#allocation5 + $0xc8] sm:$0xff]
        %v228 = vld [vmem:[#allocation5 + $0xd0] sm:$0xff]
        %v229 = vld [vmem:[#allocation5 + $0xd8] sm:$0xff]
        %v230 = vld [vmem:[#allocation5 + $0xe0] sm:$0xff]
        %v231 = vld [vmem:[#allocation5 + $0xe8] sm:$0xff]
        %v232 = vld [vmem:[#allocation5 + $0xf0] sm:$0xff]
        %v233 = vld [vmem:[#allocation5 + $0xf8] sm:$0xff]
        %v234 = vld [vmem:[#allocation5 + $0x100] sm:$0xff]
        %v235 = vld [vmem:[#allocation5 + $0x108] sm:$0xff]
        %v236 = vld [vmem:[#allocation5 + $0x110] sm:$0xff]
        %v237 = vld [vmem:[#allocation5 + $0x118] sm:$0xff]
        %v238 = vld [vmem:[#allocation5 + $0x120] sm:$0xff]
        %v239 = vld [vmem:[#allocation5 + $0x128] sm:$0xff]
        %v240 = vld [vmem:[#allocation5 + $0x130] sm:$0xff]
        %v241 = vld [vmem:[#allocation5 + $0x138] sm:$0xff]
        %v242 = vld [vmem:[#allocation5 + $0x140] sm:$0xff]
        %v243 = vld [vmem:[#allocation5 + $0x148] sm:$0xff]
        %v244 = vld [vmem:[#allocation5 + $0x150] sm:$0xff]
        %v245 = vld [vmem:[#allocation5 + $0x158] sm:$0xff]
        %v246 = vld [vmem:[#allocation5 + $0x160] sm:$0xff]
        %v247 = vld [vmem:[#allocation5 + $0x168] sm:$0xff]
        %v248 = vld [vmem:[#allocation5 + $0x170] sm:$0xff]
        %v249 = vld [vmem:[#allocation5 + $0x178] sm:$0xff]
        %v250 = vld [vmem:[#allocation5 + $0x180] sm:$0xff]
        %v251 = vld [vmem:[#allocation5 + $0x188] sm:$0xff]
        %v252 = vld [vmem:[#allocation5 + $0x190] sm:$0xff]
        %v253 = vld [vmem:[#allocation5 + $0x198] sm:$0xff]
        %v254 = vld [vmem:[#allocation5 + $0x1a0] sm:$0xff]
        %v255 = vld [vmem:[#allocation5 + $0x1a8] sm:$0xff]
        %v256 = vld [vmem:[#allocation5 + $0x1b0] sm:$0xff]
        %v257 = vld [vmem:[#allocation5 + $0x1b8] sm:$0xff]
        %v258 = vld [vmem:[#allocation5 + $0x1c0] sm:$0xff]
        %v259 = vld [vmem:[#allocation5 + $0x1c8] sm:$0xff]
        %v260 = vld [vmem:[#allocation5 + $0x1d0] sm:$0xff]
        %v261 = vld [vmem:[#allocation5 + $0x1d8] sm:$0xff]
        %v262 = vld [vmem:[#allocation5 + $0x1e0] sm:$0xff]
        %v263 = vld [vmem:[#allocation5 + $0x1e8] sm:$0xff]
        %v264 = vld [vmem:[#allocation5 + $0x1f0] sm:$0xff]
        %v265 = vld [vmem:[#allocation5 + $0x1f8] sm:$0xff]
        %v266 = vld [vmem:[%s2] sm:$0xf]
        %v268 = vlaneseq
        %v269 = vshrl.u32 %v268, 7
        %v270 = vsub.s32 0, %v269
        %v271 = vrot.slane %v266, %v270
        %v272 = vlaneseq
        %v273 = vshrl.u32 %v272, 7
        %v274 = vsub.s32 1, %v273
        %v275 = vrot.slane %v266, %v274
        %v276 = vlaneseq
        %v277 = vshrl.u32 %v276, 7
        %v278 = vsub.s32 2, %v277
        %v279 = vrot.slane %v266, %v278
        %v280 = vlaneseq
        %v281 = vshrl.u32 %v280, 7
        %v282 = vsub.s32 3, %v281
        %v283 = vrot.slane %v266, %v282
        %v288 = vand.u32 %v203, 4294901760
        %289 = vmatprep.subr.mxu0 %v288
        %v290 = vand.u32 %v202, 4294901760
        %291 = vmatpush1.msra.mxu0 %v290
        %v292 = vand.u32 %v207, 4294901760
        %293 = vmatprep.subr.mxu0 %v292
        %v294 = vand.u32 %v206, 4294901760
        %295 = vmatpush1.msra.mxu0 %v294
        %v296 = vand.u32 %v211, 4294901760
        %297 = vmatprep.subr.mxu0 %v296
        %v298 = vand.u32 %v210, 4294901760
        %299 = vmatpush1.msra.mxu0 %v298
        %v300 = vand.u32 %v215, 4294901760
        %301 = vmatprep.subr.mxu0 %v300
        %v302 = vand.u32 %v214, 4294901760
        %303 = vmatpush1.msra.mxu0 %v302
        %v304 = vand.u32 %v219, 4294901760
        %305 = vmatprep.subr.mxu0 %v304
        %v306 = vand.u32 %v218, 4294901760
        %307 = vmatpush1.msra.mxu0 %v306
        %v308 = vand.u32 %v223, 4294901760
        %309 = vmatprep.subr.mxu0 %v308
        %v310 = vand.u32 %v222, 4294901760
        %311 = vmatpush1.msra.mxu0 %v310
        %v312 = vand.u32 %v227, 4294901760
        %313 = vmatprep.subr.mxu0 %v312
        %v314 = vand.u32 %v226, 4294901760
        %315 = vmatpush1.msra.mxu0 %v314
        %v316 = vand.u32 %v231, 4294901760
        %317 = vmatprep.subr.mxu0 %v316
        %v318 = vand.u32 %v230, 4294901760
        %319 = vmatpush1.msra.mxu0 %v318
        %v320 = vand.u32 %v235, 4294901760
        %321 = vmatprep.subr.mxu0 %v320
        %v322 = vand.u32 %v234, 4294901760
        %323 = vmatpush1.msra.mxu0 %v322
        %v324 = vand.u32 %v239, 4294901760
        %325 = vmatprep.subr.mxu0 %v324
        %v326 = vand.u32 %v238, 4294901760
        %327 = vmatpush1.msra.mxu0 %v326
        %v328 = vand.u32 %v243, 4294901760
        %329 = vmatprep.subr.mxu0 %v328
        %v330 = vand.u32 %v242, 4294901760
        %331 = vmatpush1.msra.mxu0 %v330
        %v332 = vand.u32 %v247, 4294901760
        %333 = vmatprep.subr.mxu0 %v332
        %v334 = vand.u32 %v246, 4294901760
        %335 = vmatpush1.msra.mxu0 %v334
        %v336 = vand.u32 %v251, 4294901760
        %337 = vmatprep.subr.mxu0 %v336
        %v338 = vand.u32 %v250, 4294901760
        %339 = vmatpush1.msra.mxu0 %v338
        %v340 = vand.u32 %v255, 4294901760
        %341 = vmatprep.subr.mxu0 %v340
        %v342 = vand.u32 %v254, 4294901760
        %343 = vmatpush1.msra.mxu0 %v342
        %v344 = vand.u32 %v259, 4294901760
        %345 = vmatprep.subr.mxu0 %v344
        %v346 = vand.u32 %v258, 4294901760
        %347 = vmatpush1.msra.mxu0 %v346
        %v348 = vand.u32 %v263, 4294901760
        %349 = vmatprep.subr.mxu0 %v348
        %v350 = vand.u32 %v262, 4294901760
        %351 = vmatpush1.msra.mxu0 %v350
        %352 = vmatprep.subr.mxu0 0.0
        %353 = vmatpush1.msra.mxu0 0.0
        %354 = vmatprep.subr.mxu0 0.0
        %355 = vmatpush1.msra.mxu0 0.0
        %356 = vmatprep.subr.mxu0 0.0
        %357 = vmatpush1.msra.mxu0 0.0
        %358 = vmatprep.subr.mxu0 0.0
        %359 = vmatpush1.msra.mxu0 0.0
        %360 = vmatprep.subr.mxu0 0.0
        %361 = vmatpush1.msra.mxu0 0.0
        %362 = vmatprep.subr.mxu0 0.0
        %363 = vmatpush1.msra.mxu0 0.0
        %364 = vmatprep.subr.mxu0 0.0
        %365 = vmatpush1.msra.mxu0 0.0
        %366 = vmatprep.subr.mxu0 0.0
        %367 = vmatpush1.msra.mxu0 0.0
        %368 = vmatprep.subr.mxu0 0.0
        %369 = vmatpush1.msra.mxu0 0.0
        %370 = vmatprep.subr.mxu0 0.0
        %371 = vmatpush1.msra.mxu0 0.0
        %372 = vmatprep.subr.mxu0 0.0
        %373 = vmatpush1.msra.mxu0 0.0
        %374 = vmatprep.subr.mxu0 0.0
        %375 = vmatpush1.msra.mxu0 0.0
        %376 = vmatprep.subr.mxu0 0.0
        %377 = vmatpush1.msra.mxu0 0.0
        %378 = vmatprep.subr.mxu0 0.0
        %379 = vmatpush1.msra.mxu0 0.0
        %380 = vmatprep.subr.mxu0 0.0
        %381 = vmatpush1.msra.mxu0 0.0
        %382 = vmatprep.subr.mxu0 0.0
        %383 = vmatpush1.msra.mxu0 0.0
        %384 = vmatprep.mubr.f32.mxu0 0.0
        %v385 = vand.u32 %v201, 4294901760
        %v386 = vsub.f32 %v201, %v385
        %v387 = vand.u32 %v386, 4294901760
        %v388 = vsub.f32 %v386, %v387
        %v389 = vand.u32 %v388, 4294901760
        %390 = vmatmul.mubr.f32.gmra.mrb[0].mxu0 %v389
        %v391 = vpop.f32.mrb[0].mxu0
        %v392 = vadd.f32 %v271, %v391
        %v393 = vpop.f32.mrb[0].mxu0
        %v394 = vadd.f32 %v275, %v393
        %395 = vdwg.mxu0
        %v396 = vand.u32 %v203, 4294901760
        %v397 = vsub.f32 %v203, %v396
        %v398 = vand.u32 %v397, 4294901760
        %v399 = vsub.f32 %v397, %v398
        %v400 = vand.u32 %v399, 4294901760
        %401 = vmatprep.subr.mxu0 %v400
        %v402 = vand.u32 %v202, 4294901760
        %v403 = vsub.f32 %v202, %v402
        %v404 = vand.u32 %v403, 4294901760
        %v405 = vsub.f32 %v403, %v404
        %v406 = vand.u32 %v405, 4294901760
        %407 = vmatpush1.msra.mxu0 %v406
        %v408 = vand.u32 %v207, 4294901760
        %v409 = vsub.f32 %v207, %v408
        %v410 = vand.u32 %v409, 4294901760
        %v411 = vsub.f32 %v409, %v410
        %v412 = vand.u32 %v411, 4294901760
        %413 = vmatprep.subr.mxu0 %v412
        %v414 = vand.u32 %v206, 4294901760
        %v415 = vsub.f32 %v206, %v414
        %v416 = vand.u32 %v415, 4294901760
        %v417 = vsub.f32 %v415, %v416
        %v418 = vand.u32 %v417, 4294901760
        %419 = vmatpush1.msra.mxu0 %v418
        %v420 = vand.u32 %v211, 4294901760
        %v421 = vsub.f32 %v211, %v420
        %v422 = vand.u32 %v421, 4294901760
        %v423 = vsub.f32 %v421, %v422
        %v424 = vand.u32 %v423, 4294901760
        %425 = vmatprep.subr.mxu0 %v424
        %v426 = vand.u32 %v210, 4294901760
        %v427 = vsub.f32 %v210, %v426
        %v428 = vand.u32 %v427, 4294901760
        %v429 = vsub.f32 %v427, %v428
        %v430 = vand.u32 %v429, 4294901760
        %431 = vmatpush1.msra.mxu0 %v430
        %v432 = vand.u32 %v215, 4294901760
        %v433 = vsub.f32 %v215, %v432
        %v434 = vand.u32 %v433, 4294901760
        %v435 = vsub.f32 %v433, %v434
        %v436 = vand.u32 %v435, 4294901760
        %437 = vmatprep.subr.mxu0 %v436
        %v438 = vand.u32 %v214, 4294901760
        %v439 = vsub.f32 %v214, %v438
        %v440 = vand.u32 %v439, 4294901760
        %v441 = vsub.f32 %v439, %v440
        %v442 = vand.u32 %v441, 4294901760
        %443 = vmatpush1.msra.mxu0 %v442
        %v444 = vand.u32 %v219, 4294901760
        %v445 = vsub.f32 %v219, %v444
        %v446 = vand.u32 %v445, 4294901760
        %v447 = vsub.f32 %v445, %v446
        %v448 = vand.u32 %v447, 4294901760
        %449 = vmatprep.subr.mxu0 %v448
        %v450 = vand.u32 %v218, 4294901760
        %v451 = vsub.f32 %v218, %v450
        %v452 = vand.u32 %v451, 4294901760
        %v453 = vsub.f32 %v451, %v452
        %v454 = vand.u32 %v453, 4294901760
        %455 = vmatpush1.msra.mxu0 %v454
        %v456 = vand.u32 %v223, 4294901760
        %v457 = vsub.f32 %v223, %v456
        %v458 = vand.u32 %v457, 4294901760
        %v459 = vsub.f32 %v457, %v458
        %v460 = vand.u32 %v459, 4294901760
        %461 = vmatprep.subr.mxu0 %v460
        %v462 = vand.u32 %v222, 4294901760
        %v463 = vsub.f32 %v222, %v462
        %v464 = vand.u32 %v463, 4294901760
        %v465 = vsub.f32 %v463, %v464
        %v466 = vand.u32 %v465, 4294901760
        %467 = vmatpush1.msra.mxu0 %v466
        %v468 = vand.u32 %v227, 4294901760
        %v469 = vsub.f32 %v227, %v468
        %v470 = vand.u32 %v469, 4294901760
        %v471 = vsub.f32 %v469, %v470
        %v472 = vand.u32 %v471, 4294901760
        %473 = vmatprep.subr.mxu0 %v472
        %v474 = vand.u32 %v226, 4294901760
        %v475 = vsub.f32 %v226, %v474
        %v476 = vand.u32 %v475, 4294901760
        %v477 = vsub.f32 %v475, %v476
        %v478 = vand.u32 %v477, 4294901760
        %479 = vmatpush1.msra.mxu0 %v478
        %v480 = vand.u32 %v231, 4294901760
        %v481 = vsub.f32 %v231, %v480
        %v482 = vand.u32 %v481, 4294901760
        %v483 = vsub.f32 %v481, %v482
        %v484 = vand.u32 %v483, 4294901760
        %485 = vmatprep.subr.mxu0 %v484
        %v486 = vand.u32 %v230, 4294901760
        %v487 = vsub.f32 %v230, %v486
        %v488 = vand.u32 %v487, 4294901760
        %v489 = vsub.f32 %v487, %v488
        %v490 = vand.u32 %v489, 4294901760
        %491 = vmatpush1.msra.mxu0 %v490
        %v492 = vand.u32 %v235, 4294901760
        %v493 = vsub.f32 %v235, %v492
        %v494 = vand.u32 %v493, 4294901760
        %v495 = vsub.f32 %v493, %v494
        %v496 = vand.u32 %v495, 4294901760
        %497 = vmatprep.subr.mxu0 %v496
        %v498 = vand.u32 %v234, 4294901760
        %v499 = vsub.f32 %v234, %v498
        %v500 = vand.u32 %v499, 4294901760
        %v501 = vsub.f32 %v499, %v500
        %v502 = vand.u32 %v501, 4294901760
        %503 = vmatpush1.msra.mxu0 %v502
        %v504 = vand.u32 %v239, 4294901760
        %v505 = vsub.f32 %v239, %v504
        %v506 = vand.u32 %v505, 4294901760
        %v507 = vsub.f32 %v505, %v506
        %v508 = vand.u32 %v507, 4294901760
        %509 = vmatprep.subr.mxu0 %v508
        %v510 = vand.u32 %v238, 4294901760
        %v511 = vsub.f32 %v238, %v510
        %v512 = vand.u32 %v511, 4294901760
        %v513 = vsub.f32 %v511, %v512
        %v514 = vand.u32 %v513, 4294901760
        %515 = vmatpush1.msra.mxu0 %v514
        %v516 = vand.u32 %v243, 4294901760
        %v517 = vsub.f32 %v243, %v516
        %v518 = vand.u32 %v517, 4294901760
        %v519 = vsub.f32 %v517, %v518
        %v520 = vand.u32 %v519, 4294901760
        %521 = vmatprep.subr.mxu0 %v520
        %v522 = vand.u32 %v242, 4294901760
        %v523 = vsub.f32 %v242, %v522
        %v524 = vand.u32 %v523, 4294901760
        %v525 = vsub.f32 %v523, %v524
        %v526 = vand.u32 %v525, 4294901760
        %527 = vmatpush1.msra.mxu0 %v526
        %v528 = vand.u32 %v247, 4294901760
        %v529 = vsub.f32 %v247, %v528
        %v530 = vand.u32 %v529, 4294901760
        %v531 = vsub.f32 %v529, %v530
        %v532 = vand.u32 %v531, 4294901760
        %533 = vmatprep.subr.mxu0 %v532
        %v534 = vand.u32 %v246, 4294901760
        %v535 = vsub.f32 %v246, %v534
        %v536 = vand.u32 %v535, 4294901760
        %v537 = vsub.f32 %v535, %v536
        %v538 = vand.u32 %v537, 4294901760
        %539 = vmatpush1.msra.mxu0 %v538
        %v540 = vand.u32 %v251, 4294901760
        %v541 = vsub.f32 %v251, %v540
        %v542 = vand.u32 %v541, 4294901760
        %v543 = vsub.f32 %v541, %v542
        %v544 = vand.u32 %v543, 4294901760
        %545 = vmatprep.subr.mxu0 %v544
        %v546 = vand.u32 %v250, 4294901760
        %v547 = vsub.f32 %v250, %v546
        %v548 = vand.u32 %v547, 4294901760
        %v549 = vsub.f32 %v547, %v548
        %v550 = vand.u32 %v549, 4294901760
        %551 = vmatpush1.msra.mxu0 %v550
        %v552 = vand.u32 %v255, 4294901760
        %v553 = vsub.f32 %v255, %v552
        %v554 = vand.u32 %v553, 4294901760
        %v555 = vsub.f32 %v553, %v554
        %v556 = vand.u32 %v555, 4294901760
        %557 = vmatprep.subr.mxu0 %v556
        %v558 = vand.u32 %v254, 4294901760
        %v559 = vsub.f32 %v254, %v558
        %v560 = vand.u32 %v559, 4294901760
        %v561 = vsub.f32 %v559, %v560
        %v562 = vand.u32 %v561, 4294901760
        %563 = vmatpush1.msra.mxu0 %v562
        %v564 = vand.u32 %v259, 4294901760
        %v565 = vsub.f32 %v259, %v564
        %v566 = vand.u32 %v565, 4294901760
        %v567 = vsub.f32 %v565, %v566
        %v568 = vand.u32 %v567, 4294901760
        %569 = vmatprep.subr.mxu0 %v568
        %v570 = vand.u32 %v258, 4294901760
        %v571 = vsub.f32 %v258, %v570
        %v572 = vand.u32 %v571, 4294901760
        %v573 = vsub.f32 %v571, %v572
        %v574 = vand.u32 %v573, 4294901760
        %575 = vmatpush1.msra.mxu0 %v574
        %v576 = vand.u32 %v263, 4294901760
        %v577 = vsub.f32 %v263, %v576
        %v578 = vand.u32 %v577, 4294901760
        %v579 = vsub.f32 %v577, %v578
        %v580 = vand.u32 %v579, 4294901760
        %581 = vmatprep.subr.mxu0 %v580
        %v582 = vand.u32 %v262, 4294901760
        %v583 = vsub.f32 %v262, %v582
        %v584 = vand.u32 %v583, 4294901760
        %v585 = vsub.f32 %v583, %v584
        %v586 = vand.u32 %v585, 4294901760
        %587 = vmatpush1.msra.mxu0 %v586
        %588 = vmatprep.subr.mxu0 0.0
        %589 = vmatpush1.msra.mxu0 0.0
        %590 = vmatprep.subr.mxu0 0.0
        %591 = vmatpush1.msra.mxu0 0.0
        %592 = vmatprep.subr.mxu0 0.0
        %593 = vmatpush1.msra.mxu0 0.0
        %594 = vmatprep.subr.mxu0 0.0
        %595 = vmatpush1.msra.mxu0 0.0
        %596 = vmatprep.subr.mxu0 0.0
        %597 = vmatpush1.msra.mxu0 0.0
        %598 = vmatprep.subr.mxu0 0.0
        %599 = vmatpush1.msra.mxu0 0.0
        %600 = vmatprep.subr.mxu0 0.0
        %601 = vmatpush1.msra.mxu0 0.0
        %602 = vmatprep.subr.mxu0 0.0
        %603 = vmatpush1.msra.mxu0 0.0
        %604 = vmatprep.subr.mxu0 0.0
        %605 = vmatpush1.msra.mxu0 0.0
        %606 = vmatprep.subr.mxu0 0.0
        %607 = vmatpush1.msra.mxu0 0.0
        %608 = vmatprep.subr.mxu0 0.0
        %609 = vmatpush1.msra.mxu0 0.0
        %610 = vmatprep.subr.mxu0 0.0
        %611 = vmatpush1.msra.mxu0 0.0
        %612 = vmatprep.subr.mxu0 0.0
        %613 = vmatpush1.msra.mxu0 0.0
        %614 = vmatprep.subr.mxu0 0.0
        %615 = vmatpush1.msra.mxu0 0.0
        %616 = vmatprep.subr.mxu0 0.0
        %617 = vmatpush1.msra.mxu0 0.0
        %618 = vmatprep.subr.mxu0 0.0
        %619 = vmatpush1.msra.mxu0 0.0
        %620 = vmatprep.mubr.f32.mxu0 0.0
        %v621 = vand.u32 %v201, 4294901760
        %622 = vmatmul.mubr.f32.gmra.mrb[0].mxu0 %v621
        %v623 = vpop.f32.mrb[0].mxu0
        %v624 = vadd.f32 %v392, %v623
        %v625 = vpop.f32.mrb[0].mxu0
        %v626 = vadd.f32 %v394, %v625
        %627 = vdwg.mxu0
        %v628 = vand.u32 %v203, 4294901760
        %v629 = vsub.f32 %v203, %v628
        %630 = vmatprep.subr.mxu0 %v629
        %v631 = vand.u32 %v202, 4294901760
        %v632 = vsub.f32 %v202, %v631
        %633 = vmatpush1.msra.mxu0 %v632
        %v634 = vand.u32 %v207, 4294901760
        %v635 = vsub.f32 %v207, %v634
        %636 = vmatprep.subr.mxu0 %v635
        %v637 = vand.u32 %v206, 4294901760
        %v638 = vsub.f32 %v206, %v637
        %639 = vmatpush1.msra.mxu0 %v638
        %v640 = vand.u32 %v211, 4294901760
        %v641 = vsub.f32 %v211, %v640
        %642 = vmatprep.subr.mxu0 %v641
        %v643 = vand.u32 %v210, 4294901760
        %v644 = vsub.f32 %v210, %v643
        %645 = vmatpush1.msra.mxu0 %v644
        %v646 = vand.u32 %v215, 4294901760
        %v647 = vsub.f32 %v215, %v646
        %648 = vmatprep.subr.mxu0 %v647
        %v649 = vand.u32 %v214, 4294901760
        %v650 = vsub.f32 %v214, %v649
        %651 = vmatpush1.msra.mxu0 %v650
        %v652 = vand.u32 %v219, 4294901760
        %v653 = vsub.f32 %v219, %v652
        %654 = vmatprep.subr.mxu0 %v653
        %v655 = vand.u32 %v218, 4294901760
        %v656 = vsub.f32 %v218, %v655
        %657 = vmatpush1.msra.mxu0 %v656
        %v658 = vand.u32 %v223, 4294901760
        %v659 = vsub.f32 %v223, %v658
        %660 = vmatprep.subr.mxu0 %v659
        %v661 = vand.u32 %v222, 4294901760
        %v662 = vsub.f32 %v222, %v661
        %663 = vmatpush1.msra.mxu0 %v662
        %v664 = vand.u32 %v227, 4294901760
        %v665 = vsub.f32 %v227, %v664
        %666 = vmatprep.subr.mxu0 %v665
        %v667 = vand.u32 %v226, 4294901760
        %v668 = vsub.f32 %v226, %v667
        %669 = vmatpush1.msra.mxu0 %v668
        %v670 = vand.u32 %v231, 4294901760
        %v671 = vsub.f32 %v231, %v670
        %672 = vmatprep.subr.mxu0 %v671
        %v673 = vand.u32 %v230, 4294901760
        %v674 = vsub.f32 %v230, %v673
        %675 = vmatpush1.msra.mxu0 %v674
        %v676 = vand.u32 %v235, 4294901760
        %v677 = vsub.f32 %v235, %v676
        %678 = vmatprep.subr.mxu0 %v677
        %v679 = vand.u32 %v234, 4294901760
        %v680 = vsub.f32 %v234, %v679
        %681 = vmatpush1.msra.mxu0 %v680
        %v682 = vand.u32 %v239, 4294901760
        %v683 = vsub.f32 %v239, %v682
        %684 = vmatprep.subr.mxu0 %v683
        %v685 = vand.u32 %v238, 4294901760
        %v686 = vsub.f32 %v238, %v685
        %687 = vmatpush1.msra.mxu0 %v686
        %v688 = vand.u32 %v243, 4294901760
        %v689 = vsub.f32 %v243, %v688
        %690 = vmatprep.subr.mxu0 %v689
        %v691 = vand.u32 %v242, 4294901760
        %v692 = vsub.f32 %v242, %v691
        %693 = vmatpush1.msra.mxu0 %v692
        %v694 = vand.u32 %v247, 4294901760
        %v695 = vsub.f32 %v247, %v694
        %696 = vmatprep.subr.mxu0 %v695
        %v697 = vand.u32 %v246, 4294901760
        %v698 = vsub.f32 %v246, %v697
        %699 = vmatpush1.msra.mxu0 %v698
        %v700 = vand.u32 %v251, 4294901760
        %v701 = vsub.f32 %v251, %v700
        %702 = vmatprep.subr.mxu0 %v701
        %v703 = vand.u32 %v250, 4294901760
        %v704 = vsub.f32 %v250, %v703
        %705 = vmatpush1.msra.mxu0 %v704
        %v706 = vand.u32 %v255, 4294901760
        %v707 = vsub.f32 %v255, %v706
        %708 = vmatprep.subr.mxu0 %v707
        %v709 = vand.u32 %v254, 4294901760
        %v710 = vsub.f32 %v254, %v709
        %711 = vmatpush1.msra.mxu0 %v710
        %v712 = vand.u32 %v259, 4294901760
        %v713 = vsub.f32 %v259, %v712
        %714 = vmatprep.subr.mxu0 %v713
        %v715 = vand.u32 %v258, 4294901760
        %v716 = vsub.f32 %v258, %v715
        %717 = vmatpush1.msra.mxu0 %v716
        %v718 = vand.u32 %v263, 4294901760
        %v719 = vsub.f32 %v263, %v718
        %720 = vmatprep.subr.mxu0 %v719
        %v721 = vand.u32 %v262, 4294901760
        %v722 = vsub.f32 %v262, %v721
        %723 = vmatpush1.msra.mxu0 %v722
        %724 = vmatprep.subr.mxu0 0.0
        %725 = vmatpush1.msra.mxu0 0.0
        %726 = vmatprep.subr.mxu0 0.0
        %727 = vmatpush1.msra.mxu0 0.0
        %728 = vmatprep.subr.mxu0 0.0
        %729 = vmatpush1.msra.mxu0 0.0
        %730 = vmatprep.subr.mxu0 0.0
        %731 = vmatpush1.msra.mxu0 0.0
        %732 = vmatprep.subr.mxu0 0.0
        %733 = vmatpush1.msra.mxu0 0.0
        %734 = vmatprep.subr.mxu0 0.0
        %735 = vmatpush1.msra.mxu0 0.0
        %736 = vmatprep.subr.mxu0 0.0
        %737 = vmatpush1.msra.mxu0 0.0
        %738 = vmatprep.subr.mxu0 0.0
        %739 = vmatpush1.msra.mxu0 0.0
        %740 = vmatprep.subr.mxu0 0.0
        %741 = vmatpush1.msra.mxu0 0.0
        %742 = vmatprep.subr.mxu0 0.0
        %743 = vmatpush1.msra.mxu0 0.0
        %744 = vmatprep.subr.mxu0 0.0
        %745 = vmatpush1.msra.mxu0 0.0
        %746 = vmatprep.subr.mxu0 0.0
        %747 = vmatpush1.msra.mxu0 0.0
        %748 = vmatprep.subr.mxu0 0.0
        %749 = vmatpush1.msra.mxu0 0.0
        %750 = vmatprep.subr.mxu0 0.0
        %751 = vmatpush1.msra.mxu0 0.0
        %752 = vmatprep.subr.mxu0 0.0
        %753 = vmatpush1.msra.mxu0 0.0
        %754 = vmatprep.subr.mxu0 0.0
        %755 = vmatpush1.msra.mxu0 0.0
        %756 = vmatprep.mubr.f32.mxu0 0.0
        %v757 = vand.u32 %v201, 4294901760
        %v758 = vsub.f32 %v201, %v757
        %759 = vmatmul.mubr.f32.gmra.mrb[0].mxu0 %v758
        %v760 = vpop.f32.mrb[0].mxu0
        %v761 = vadd.f32 %v624, %v760
        %v762 = vpop.f32.mrb[0].mxu0
        %v763 = vadd.f32 %v626, %v762
        %764 = vdwg.mxu0
        %v765 = vand.u32 %v203, 4294901760
        %766 = vmatprep.subr.mxu0 %v765
        %v767 = vand.u32 %v202, 4294901760
        %768 = vmatpush1.msra.mxu0 %v767
        %v769 = vand.u32 %v207, 4294901760
        %770 = vmatprep.subr.mxu0 %v769
        %v771 = vand.u32 %v206, 4294901760
        %772 = vmatpush1.msra.mxu0 %v771
        %v773 = vand.u32 %v211, 4294901760
        %774 = vmatprep.subr.mxu0 %v773
        %v775 = vand.u32 %v210, 4294901760
        %776 = vmatpush1.msra.mxu0 %v775
        %v777 = vand.u32 %v215, 4294901760
        %778 = vmatprep.subr.mxu0 %v777
        %v779 = vand.u32 %v214, 4294901760
        %780 = vmatpush1.msra.mxu0 %v779
        %v781 = vand.u32 %v219, 4294901760
        %782 = vmatprep.subr.mxu0 %v781
        %v783 = vand.u32 %v218, 4294901760
        %784 = vmatpush1.msra.mxu0 %v783
        %v785 = vand.u32 %v223, 4294901760
        %786 = vmatprep.subr.mxu0 %v785
        %v787 = vand.u32 %v222, 4294901760
        %788 = vmatpush1.msra.mxu0 %v787
        %v789 = vand.u32 %v227, 4294901760
        %790 = vmatprep.subr.mxu0 %v789
        %v791 = vand.u32 %v226, 4294901760
        %792 = vmatpush1.msra.mxu0 %v791
        %v793 = vand.u32 %v231, 4294901760
        %794 = vmatprep.subr.mxu0 %v793
        %v795 = vand.u32 %v230, 4294901760
        %796 = vmatpush1.msra.mxu0 %v795
        %v797 = vand.u32 %v235, 4294901760
        %798 = vmatprep.subr.mxu0 %v797
        %v799 = vand.u32 %v234, 4294901760
        %800 = vmatpush1.msra.mxu0 %v799
        %v801 = vand.u32 %v239, 4294901760
        %802 = vmatprep.subr.mxu0 %v801
        %v803 = vand.u32 %v238, 4294901760
        %804 = vmatpush1.msra.mxu0 %v803
        %v805 = vand.u32 %v243, 4294901760
        %806 = vmatprep.subr.mxu0 %v805
        %v807 = vand.u32 %v242, 4294901760
        %808 = vmatpush1.msra.mxu0 %v807
        %v809 = vand.u32 %v247, 4294901760
        %810 = vmatprep.subr.mxu0 %v809
        %v811 = vand.u32 %v246, 4294901760
        %812 = vmatpush1.msra.mxu0 %v811
        %v813 = vand.u32 %v251, 4294901760
        %814 = vmatprep.subr.mxu0 %v813
        %v815 = vand.u32 %v250, 4294901760
        %816 = vmatpush1.msra.mxu0 %v815
        %v817 = vand.u32 %v255, 4294901760
        %818 = vmatprep.subr.mxu0 %v817
        %v819 = vand.u32 %v254, 4294901760
        %820 = vmatpush1.msra.mxu0 %v819
        %v821 = vand.u32 %v259, 4294901760
        %822 = vmatprep.subr.mxu0 %v821
        %v823 = vand.u32 %v258, 4294901760
        %824 = vmatpush1.msra.mxu0 %v823
        %v825 = vand.u32 %v263, 4294901760
        %826 = vmatprep.subr.mxu0 %v825
        %v827 = vand.u32 %v262, 4294901760
        %828 = vmatpush1.msra.mxu0 %v827
        %829 = vmatprep.subr.mxu0 0.0
        %830 = vmatpush1.msra.mxu0 0.0
        %831 = vmatprep.subr.mxu0 0.0
        %832 = vmatpush1.msra.mxu0 0.0
        %833 = vmatprep.subr.mxu0 0.0
        %834 = vmatpush1.msra.mxu0 0.0
        %835 = vmatprep.subr.mxu0 0.0
        %836 = vmatpush1.msra.mxu0 0.0
        %837 = vmatprep.subr.mxu0 0.0
        %838 = vmatpush1.msra.mxu0 0.0
        %839 = vmatprep.subr.mxu0 0.0
        %840 = vmatpush1.msra.mxu0 0.0
        %841 = vmatprep.subr.mxu0 0.0
        %842 = vmatpush1.msra.mxu0 0.0
        %843 = vmatprep.subr.mxu0 0.0
        %844 = vmatpush1.msra.mxu0 0.0
        %845 = vmatprep.subr.mxu0 0.0
        %846 = vmatpush1.msra.mxu0 0.0
        %847 = vmatprep.subr.mxu0 0.0
        %848 = vmatpush1.msra.mxu0 0.0
        %849 = vmatprep.subr.mxu0 0.0
        %850 = vmatpush1.msra.mxu0 0.0
        %851 = vmatprep.subr.mxu0 0.0
        %852 = vmatpush1.msra.mxu0 0.0
        %853 = vmatprep.subr.mxu0 0.0
        %854 = vmatpush1.msra.mxu0 0.0
        %855 = vmatprep.subr.mxu0 0.0
        %856 = vmatpush1.msra.mxu0 0.0
        %857 = vmatprep.subr.mxu0 0.0
        %858 = vmatpush1.msra.mxu0 0.0
        %859 = vmatprep.subr.mxu0 0.0
        %860 = vmatpush1.msra.mxu0 0.0
        %861 = vmatprep.mubr.f32.mxu0 0.0
        %v862 = vand.u32 %v201, 4294901760
        %v863 = vsub.f32 %v201, %v862
        %v864 = vand.u32 %v863, 4294901760
        %865 = vmatmul.mubr.f32.gmra.mrb[0].mxu0 %v864
        %v866 = vpop.f32.mrb[0].mxu0
        %v867 = vadd.f32 %v761, %v866
        %v868 = vpop.f32.mrb[0].mxu0
        %v869 = vadd.f32 %v763, %v868
        %870 = vdwg.mxu0
        %v871 = vand.u32 %v203, 4294901760
        %v872 = vsub.f32 %v203, %v871
        %v873 = vand.u32 %v872, 4294901760
        %874 = vmatprep.subr.mxu0 %v873
        %v875 = vand.u32 %v202, 4294901760
        %v876 = vsub.f32 %v202, %v875
        %v877 = vand.u32 %v876, 4294901760
        %878 = vmatpush1.msra.mxu0 %v877
        %v879 = vand.u32 %v207, 4294901760
        %v880 = vsub.f32 %v207, %v879
        %v881 = vand.u32 %v880, 4294901760
        %882 = vmatprep.subr.mxu0 %v881
        %v883 = vand.u32 %v206, 4294901760
        %v884 = vsub.f32 %v206, %v883
        %v885 = vand.u32 %v884, 4294901760
        %886 = vmatpush1.msra.mxu0 %v885
        %v887 = vand.u32 %v211, 4294901760
        %v888 = vsub.f32 %v211, %v887
        %v889 = vand.u32 %v888, 4294901760
        %890 = vmatprep.subr.mxu0 %v889
        %v891 = vand.u32 %v210, 4294901760
        %v892 = vsub.f32 %v210, %v891
        %v893 = vand.u32 %v892, 4294901760
        %894 = vmatpush1.msra.mxu0 %v893
        %v895 = vand.u32 %v215, 4294901760
        %v896 = vsub.f32 %v215, %v895
        %v897 = vand.u32 %v896, 4294901760
        %898 = vmatprep.subr.mxu0 %v897
        %v899 = vand.u32 %v214, 4294901760
        %v900 = vsub.f32 %v214, %v899
        %v901 = vand.u32 %v900, 4294901760
        %902 = vmatpush1.msra.mxu0 %v901
        %v903 = vand.u32 %v219, 4294901760
        %v904 = vsub.f32 %v219, %v903
        %v905 = vand.u32 %v904, 4294901760
        %906 = vmatprep.subr.mxu0 %v905
        %v907 = vand.u32 %v218, 4294901760
        %v908 = vsub.f32 %v218, %v907
        %v909 = vand.u32 %v908, 4294901760
        %910 = vmatpush1.msra.mxu0 %v909
        %v911 = vand.u32 %v223, 4294901760
        %v912 = vsub.f32 %v223, %v911
        %v913 = vand.u32 %v912, 4294901760
        %914 = vmatprep.subr.mxu0 %v913
        %v915 = vand.u32 %v222, 4294901760
        %v916 = vsub.f32 %v222, %v915
        %v917 = vand.u32 %v916, 4294901760
        %918 = vmatpush1.msra.mxu0 %v917
        %v919 = vand.u32 %v227, 4294901760
        %v920 = vsub.f32 %v227, %v919
        %v921 = vand.u32 %v920, 4294901760
        %922 = vmatprep.subr.mxu0 %v921
        %v923 = vand.u32 %v226, 4294901760
        %v924 = vsub.f32 %v226, %v923
        %v925 = vand.u32 %v924, 4294901760
        %926 = vmatpush1.msra.mxu0 %v925
        %v927 = vand.u32 %v231, 4294901760
        %v928 = vsub.f32 %v231, %v927
        %v929 = vand.u32 %v928, 4294901760
        %930 = vmatprep.subr.mxu0 %v929
        %v931 = vand.u32 %v230, 4294901760
        %v932 = vsub.f32 %v230, %v931
        %v933 = vand.u32 %v932, 4294901760
        %934 = vmatpush1.msra.mxu0 %v933
        %v935 = vand.u32 %v235, 4294901760
        %v936 = vsub.f32 %v235, %v935
        %v937 = vand.u32 %v936, 4294901760
        %938 = vmatprep.subr.mxu0 %v937
        %v939 = vand.u32 %v234, 4294901760
        %v940 = vsub.f32 %v234, %v939
        %v941 = vand.u32 %v940, 4294901760
        %942 = vmatpush1.msra.mxu0 %v941
        %v943 = vand.u32 %v239, 4294901760
        %v944 = vsub.f32 %v239, %v943
        %v945 = vand.u32 %v944, 4294901760
        %946 = vmatprep.subr.mxu0 %v945
        %v947 = vand.u32 %v238, 4294901760
        %v948 = vsub.f32 %v238, %v947
        %v949 = vand.u32 %v948, 4294901760
        %950 = vmatpush1.msra.mxu0 %v949
        %v951 = vand.u32 %v243, 4294901760
        %v952 = vsub.f32 %v243, %v951
        %v953 = vand.u32 %v952, 4294901760
        %954 = vmatprep.subr.mxu0 %v953
        %v955 = vand.u32 %v242, 4294901760
        %v956 = vsub.f32 %v242, %v955
        %v957 = vand.u32 %v956, 4294901760
        %958 = vmatpush1.msra.mxu0 %v957
        %v959 = vand.u32 %v247, 4294901760
        %v960 = vsub.f32 %v247, %v959
        %v961 = vand.u32 %v960, 4294901760
        %962 = vmatprep.subr.mxu0 %v961
        %v963 = vand.u32 %v246, 4294901760
        %v964 = vsub.f32 %v246, %v963
        %v965 = vand.u32 %v964, 4294901760
        %966 = vmatpush1.msra.mxu0 %v965
        %v967 = vand.u32 %v251, 4294901760
        %v968 = vsub.f32 %v251, %v967
        %v969 = vand.u32 %v968, 4294901760
        %970 = vmatprep.subr.mxu0 %v969
        %v971 = vand.u32 %v250, 4294901760
        %v972 = vsub.f32 %v250, %v971
        %v973 = vand.u32 %v972, 4294901760
        %974 = vmatpush1.msra.mxu0 %v973
        %v975 = vand.u32 %v255, 4294901760
        %v976 = vsub.f32 %v255, %v975
        %v977 = vand.u32 %v976, 4294901760
        %978 = vmatprep.subr.mxu0 %v977
        %v979 = vand.u32 %v254, 4294901760
        %v980 = vsub.f32 %v254, %v979
        %v981 = vand.u32 %v980, 4294901760
        %982 = vmatpush1.msra.mxu0 %v981
        %v983 = vand.u32 %v259, 4294901760
        %v984 = vsub.f32 %v259, %v983
        %v985 = vand.u32 %v984, 4294901760
        %986 = vmatprep.subr.mxu0 %v985
        %v987 = vand.u32 %v258, 4294901760
        %v988 = vsub.f32 %v258, %v987
        %v989 = vand.u32 %v988, 4294901760
        %990 = vmatpush1.msra.mxu0 %v989
        %v991 = vand.u32 %v263, 4294901760
        %v992 = vsub.f32 %v263, %v991
        %v993 = vand.u32 %v992, 4294901760
        %994 = vmatprep.subr.mxu0 %v993
        %v995 = vand.u32 %v262, 4294901760
        %v996 = vsub.f32 %v262, %v995
        %v997 = vand.u32 %v996, 4294901760
        %998 = vmatpush1.msra.mxu0 %v997
        %999 = vmatprep.subr.mxu0 0.0
        %1000 = vmatpush1.msra.mxu0 0.0
        %1001 = vmatprep.subr.mxu0 0.0
        %1002 = vmatpush1.msra.mxu0 0.0
        %1003 = vmatprep.subr.mxu0 0.0
        %1004 = vmatpush1.msra.mxu0 0.0
        %1005 = vmatprep.subr.mxu0 0.0
        %1006 = vmatpush1.msra.mxu0 0.0
        %1007 = vmatprep.subr.mxu0 0.0
        %1008 = vmatpush1.msra.mxu0 0.0
        %1009 = vmatprep.subr.mxu0 0.0
        %1010 = vmatpush1.msra.mxu0 0.0
        %1011 = vmatprep.subr.mxu0 0.0
        %1012 = vmatpush1.msra.mxu0 0.0
        %1013 = vmatprep.subr.mxu0 0.0
        %1014 = vmatpush1.msra.mxu0 0.0
        %1015 = vmatprep.subr.mxu0 0.0
        %1016 = vmatpush1.msra.mxu0 0.0
        %1017 = vmatprep.subr.mxu0 0.0
        %1018 = vmatpush1.msra.mxu0 0.0
        %1019 = vmatprep.subr.mxu0 0.0
        %1020 = vmatpush1.msra.mxu0 0.0
        %1021 = vmatprep.subr.mxu0 0.0
        %1022 = vmatpush1.msra.mxu0 0.0
        %1023 = vmatprep.subr.mxu0 0.0
        %1024 = vmatpush1.msra.mxu0 0.0
        %1025 = vmatprep.subr.mxu0 0.0
        %1026 = vmatpush1.msra.mxu0 0.0
        %1027 = vmatprep.subr.mxu0 0.0
        %1028 = vmatpush1.msra.mxu0 0.0
        %1029 = vmatprep.subr.mxu0 0.0
        %1030 = vmatpush1.msra.mxu0 0.0
        %1031 = vmatprep.mubr.f32.mxu0 0.0
        %v1032 = vand.u32 %v201, 4294901760
        %1033 = vmatmul.mubr.f32.gmra.mrb[0].mxu0 %v1032
        %v1034 = vpop.f32.mrb[0].mxu0
        %v1035 = vadd.f32 %v867, %v1034
        %v1036 = vpop.f32.mrb[0].mxu0
        %v1037 = vadd.f32 %v869, %v1036
        %1038 = vdwg.mxu0
        %v1039 = vand.u32 %v203, 4294901760
        %1040 = vmatprep.subr.mxu0 %v1039
        %v1041 = vand.u32 %v202, 4294901760
        %1042 = vmatpush1.msra.mxu0 %v1041
        %v1043 = vand.u32 %v207, 4294901760
        %1044 = vmatprep.subr.mxu0 %v1043
        %v1045 = vand.u32 %v206, 4294901760
        %1046 = vmatpush1.msra.mxu0 %v1045
        %v1047 = vand.u32 %v211, 4294901760
        %1048 = vmatprep.subr.mxu0 %v1047
        %v1049 = vand.u32 %v210, 4294901760
        %1050 = vmatpush1.msra.mxu0 %v1049
        %v1051 = vand.u32 %v215, 4294901760
        %1052 = vmatprep.subr.mxu0 %v1051
        %v1053 = vand.u32 %v214, 4294901760
        %1054 = vmatpush1.msra.mxu0 %v1053
        %v1055 = vand.u32 %v219, 4294901760
        %1056 = vmatprep.subr.mxu0 %v1055
        %v1057 = vand.u32 %v218, 4294901760
        %1058 = vmatpush1.msra.mxu0 %v1057
        %v1059 = vand.u32 %v223, 4294901760
        %1060 = vmatprep.subr.mxu0 %v1059
        %v1061 = vand.u32 %v222, 4294901760
        %1062 = vmatpush1.msra.mxu0 %v1061
        %v1063 = vand.u32 %v227, 4294901760
        %1064 = vmatprep.subr.mxu0 %v1063
        %v1065 = vand.u32 %v226, 4294901760
        %1066 = vmatpush1.msra.mxu0 %v1065
        %v1067 = vand.u32 %v231, 4294901760
        %1068 = vmatprep.subr.mxu0 %v1067
        %v1069 = vand.u32 %v230, 4294901760
        %1070 = vmatpush1.msra.mxu0 %v1069
        %v1071 = vand.u32 %v235, 4294901760
        %1072 = vmatprep.subr.mxu0 %v1071
        %v1073 = vand.u32 %v234, 4294901760
        %1074 = vmatpush1.msra.mxu0 %v1073
        %v1075 = vand.u32 %v239, 4294901760
        %1076 = vmatprep.subr.mxu0 %v1075
        %v1077 = vand.u32 %v238, 4294901760
        %1078 = vmatpush1.msra.mxu0 %v1077
        %v1079 = vand.u32 %v243, 4294901760
        %1080 = vmatprep.subr.mxu0 %v1079
        %v1081 = vand.u32 %v242, 4294901760
        %1082 = vmatpush1.msra.mxu0 %v1081
        %v1083 = vand.u32 %v247, 4294901760
        %1084 = vmatprep.subr.mxu0 %v1083
        %v1085 = vand.u32 %v246, 4294901760
        %1086 = vmatpush1.msra.mxu0 %v1085
        %v1087 = vand.u32 %v251, 4294901760
        %1088 = vmatprep.subr.mxu0 %v1087
        %v1089 = vand.u32 %v250, 4294901760
        %1090 = vmatpush1.msra.mxu0 %v1089
        %v1091 = vand.u32 %v255, 4294901760
        %1092 = vmatprep.subr.mxu0 %v1091
        %v1093 = vand.u32 %v254, 4294901760
        %1094 = vmatpush1.msra.mxu0 %v1093
        %v1095 = vand.u32 %v259, 4294901760
        %1096 = vmatprep.subr.mxu0 %v1095
        %v1097 = vand.u32 %v258, 4294901760
        %1098 = vmatpush1.msra.mxu0 %v1097
        %v1099 = vand.u32 %v263, 4294901760
        %1100 = vmatprep.subr.mxu0 %v1099
        %v1101 = vand.u32 %v262, 4294901760
        %1102 = vmatpush1.msra.mxu0 %v1101
        %1103 = vmatprep.subr.mxu0 0.0
        %1104 = vmatpush1.msra.mxu0 0.0
        %1105 = vmatprep.subr.mxu0 0.0
        %1106 = vmatpush1.msra.mxu0 0.0
        %1107 = vmatprep.subr.mxu0 0.0
        %1108 = vmatpush1.msra.mxu0 0.0
        %1109 = vmatprep.subr.mxu0 0.0
        %1110 = vmatpush1.msra.mxu0 0.0
        %1111 = vmatprep.subr.mxu0 0.0
        %1112 = vmatpush1.msra.mxu0 0.0
        %1113 = vmatprep.subr.mxu0 0.0
        %1114 = vmatpush1.msra.mxu0 0.0
        %1115 = vmatprep.subr.mxu0 0.0
        %1116 = vmatpush1.msra.mxu0 0.0
        %1117 = vmatprep.subr.mxu0 0.0
        %1118 = vmatpush1.msra.mxu0 0.0
        %1119 = vmatprep.subr.mxu0 0.0
        %1120 = vmatpush1.msra.mxu0 0.0
        %1121 = vmatprep.subr.mxu0 0.0
        %1122 = vmatpush1.msra.mxu0 0.0
        %1123 = vmatprep.subr.mxu0 0.0
        %1124 = vmatpush1.msra.mxu0 0.0
        %1125 = vmatprep.subr.mxu0 0.0
        %1126 = vmatpush1.msra.mxu0 0.0
        %1127 = vmatprep.subr.mxu0 0.0
        %1128 = vmatpush1.msra.mxu0 0.0
        %1129 = vmatprep.subr.mxu0 0.0
        %1130 = vmatpush1.msra.mxu0 0.0
        %1131 = vmatprep.subr.mxu0 0.0
        %1132 = vmatpush1.msra.mxu0 0.0
        %1133 = vmatprep.subr.mxu0 0.0
        %1134 = vmatpush1.msra.mxu0 0.0
        %1135 = vmatprep.mubr.f32.mxu0 0.0
        %v1136 = vand.u32 %v201, 4294901760
        %1137 = vmatmul.mubr.f32.gmra.mrb[0].mxu0 %v1136
        %v1138 = vpop.f32.mrb[0].mxu0
        %v1139 = vadd.f32 %v1035, %v1138
        %v1140 = vpop.f32.mrb[0].mxu0
        %v1141 = vadd.f32 %v1037, %v1140
        %1142 = vdwg.mxu0
        %v1143 = vand.u32 %v205, 4294901760
        %1144 = vmatprep.subr.mxu0 %v1143
        %v1145 = vand.u32 %v204, 4294901760
        %1146 = vmatpush1.msra.mxu0 %v1145
        %v1147 = vand.u32 %v209, 4294901760
        %1148 = vmatprep.subr.mxu0 %v1147
        %v1149 = vand.u32 %v208, 4294901760
        %1150 = vmatpush1.msra.mxu0 %v1149
        %v1151 = vand.u32 %v213, 4294901760
        %1152 = vmatprep.subr.mxu0 %v1151
        %v1153 = vand.u32 %v212, 4294901760
        %1154 = vmatpush1.msra.mxu0 %v1153
        %v1155 = vand.u32 %v217, 4294901760
        %1156 = vmatprep.subr.mxu0 %v1155
        %v1157 = vand.u32 %v216, 4294901760
        %1158 = vmatpush1.msra.mxu0 %v1157
        %v1159 = vand.u32 %v221, 4294901760
        %1160 = vmatprep.subr.mxu0 %v1159
        %v1161 = vand.u32 %v220, 4294901760
        %1162 = vmatpush1.msra.mxu0 %v1161
        %v1163 = vand.u32 %v225, 4294901760
        %1164 = vmatprep.subr.mxu0 %v1163
        %v1165 = vand.u32 %v224, 4294901760
        %1166 = vmatpush1.msra.mxu0 %v1165
        %v1167 = vand.u32 %v229, 4294901760
        %1168 = vmatprep.subr.mxu0 %v1167
        %v1169 = vand.u32 %v228, 4294901760
        %1170 = vmatpush1.msra.mxu0 %v1169
        %v1171 = vand.u32 %v233, 4294901760
        %1172 = vmatprep.subr.mxu0 %v1171
        %v1173 = vand.u32 %v232, 4294901760
        %1174 = vmatpush1.msra.mxu0 %v1173
        %v1175 = vand.u32 %v237, 4294901760
        %1176 = vmatprep.subr.mxu0 %v1175
        %v1177 = vand.u32 %v236, 4294901760
        %1178 = vmatpush1.msra.mxu0 %v1177
        %v1179 = vand.u32 %v241, 4294901760
        %1180 = vmatprep.subr.mxu0 %v1179
        %v1181 = vand.u32 %v240, 4294901760
        %1182 = vmatpush1.msra.mxu0 %v1181
        %v1183 = vand.u32 %v245, 4294901760
        %1184 = vmatprep.subr.mxu0 %v1183
        %v1185 = vand.u32 %v244, 4294901760
        %1186 = vmatpush1.msra.mxu0 %v1185
        %v1187 = vand.u32 %v249, 4294901760
        %1188 = vmatprep.subr.mxu0 %v1187
        %v1189 = vand.u32 %v248, 4294901760
        %1190 = vmatpush1.msra.mxu0 %v1189
        %v1191 = vand.u32 %v253, 4294901760
        %1192 = vmatprep.subr.mxu0 %v1191
        %v1193 = vand.u32 %v252, 4294901760
        %1194 = vmatpush1.msra.mxu0 %v1193
        %v1195 = vand.u32 %v257, 4294901760
        %1196 = vmatprep.subr.mxu0 %v1195
        %v1197 = vand.u32 %v256, 4294901760
        %1198 = vmatpush1.msra.mxu0 %v1197
        %v1199 = vand.u32 %v261, 4294901760
        %1200 = vmatprep.subr.mxu0 %v1199
        %v1201 = vand.u32 %v260, 4294901760
        %1202 = vmatpush1.msra.mxu0 %v1201
        %v1203 = vand.u32 %v265, 4294901760
        %1204 = vmatprep.subr.mxu0 %v1203
        %v1205 = vand.u32 %v264, 4294901760
        %1206 = vmatpush1.msra.mxu0 %v1205
        %1207 = vmatprep.subr.mxu0 0.0
        %1208 = vmatpush1.msra.mxu0 0.0
        %1209 = vmatprep.subr.mxu0 0.0
        %1210 = vmatpush1.msra.mxu0 0.0
        %1211 = vmatprep.subr.mxu0 0.0
        %1212 = vmatpush1.msra.mxu0 0.0
        %1213 = vmatprep.subr.mxu0 0.0
        %1214 = vmatpush1.msra.mxu0 0.0
        %1215 = vmatprep.subr.mxu0 0.0
        %1216 = vmatpush1.msra.mxu0 0.0
        %1217 = vmatprep.subr.mxu0 0.0
        %1218 = vmatpush1.msra.mxu0 0.0
        %1219 = vmatprep.subr.mxu0 0.0
        %1220 = vmatpush1.msra.mxu0 0.0
        %1221 = vmatprep.subr.mxu0 0.0
        %1222 = vmatpush1.msra.mxu0 0.0
        %1223 = vmatprep.subr.mxu0 0.0
        %1224 = vmatpush1.msra.mxu0 0.0
        %1225 = vmatprep.subr.mxu0 0.0
        %1226 = vmatpush1.msra.mxu0 0.0
        %1227 = vmatprep.subr.mxu0 0.0
        %1228 = vmatpush1.msra.mxu0 0.0
        %1229 = vmatprep.subr.mxu0 0.0
        %1230 = vmatpush1.msra.mxu0 0.0
        %1231 = vmatprep.subr.mxu0 0.0
        %1232 = vmatpush1.msra.mxu0 0.0
        %1233 = vmatprep.subr.mxu0 0.0
        %1234 = vmatpush1.msra.mxu0 0.0
        %1235 = vmatprep.subr.mxu0 0.0
        %1236 = vmatpush1.msra.mxu0 0.0
        %1237 = vmatprep.subr.mxu0 0.0
        %1238 = vmatpush1.msra.mxu0 0.0
        %1239 = vmatprep.mubr.f32.mxu0 0.0
        %v1240 = vand.u32 %v201, 4294901760
        %v1241 = vsub.f32 %v201, %v1240
        %v1242 = vand.u32 %v1241, 4294901760
        %v1243 = vsub.f32 %v1241, %v1242
        %v1244 = vand.u32 %v1243, 4294901760
        %1245 = vmatmul.mubr.f32.gmra.mrb[0].mxu0 %v1244
        %v1246 = vpop.f32.mrb[0].mxu0
        %v1247 = vadd.f32 %v279, %v1246
        %v1248 = vpop.f32.mrb[0].mxu0
        %v1249 = vadd.f32 %v283, %v1248
        %1250 = vdwg.mxu0
        %v1251 = vand.u32 %v205, 4294901760
        %v1252 = vsub.f32 %v205, %v1251
        %v1253 = vand.u32 %v1252, 4294901760
        %v1254 = vsub.f32 %v1252, %v1253
        %v1255 = vand.u32 %v1254, 4294901760
        %1256 = vmatprep.subr.mxu0 %v1255
        %v1257 = vand.u32 %v204, 4294901760
        %v1258 = vsub.f32 %v204, %v1257
        %v1259 = vand.u32 %v1258, 4294901760
        %v1260 = vsub.f32 %v1258, %v1259
        %v1261 = vand.u32 %v1260, 4294901760
        %1262 = vmatpush1.msra.mxu0 %v1261
        %v1263 = vand.u32 %v209, 4294901760
        %v1264 = vsub.f32 %v209, %v1263
        %v1265 = vand.u32 %v1264, 4294901760
        %v1266 = vsub.f32 %v1264, %v1265
        %v1267 = vand.u32 %v1266, 4294901760
        %1268 = vmatprep.subr.mxu0 %v1267
        %v1269 = vand.u32 %v208, 4294901760
        %v1270 = vsub.f32 %v208, %v1269
        %v1271 = vand.u32 %v1270, 4294901760
        %v1272 = vsub.f32 %v1270, %v1271
        %v1273 = vand.u32 %v1272, 4294901760
        %1274 = vmatpush1.msra.mxu0 %v1273
        %v1275 = vand.u32 %v213, 4294901760
        %v1276 = vsub.f32 %v213, %v1275
        %v1277 = vand.u32 %v1276, 4294901760
        %v1278 = vsub.f32 %v1276, %v1277
        %v1279 = vand.u32 %v1278, 4294901760
        %1280 = vmatprep.subr.mxu0 %v1279
        %v1281 = vand.u32 %v212, 4294901760
        %v1282 = vsub.f32 %v212, %v1281
        %v1283 = vand.u32 %v1282, 4294901760
        %v1284 = vsub.f32 %v1282, %v1283
        %v1285 = vand.u32 %v1284, 4294901760
        %1286 = vmatpush1.msra.mxu0 %v1285
        %v1287 = vand.u32 %v217, 4294901760
        %v1288 = vsub.f32 %v217, %v1287
        %v1289 = vand.u32 %v1288, 4294901760
        %v1290 = vsub.f32 %v1288, %v1289
        %v1291 = vand.u32 %v1290, 4294901760
        %1292 = vmatprep.subr.mxu0 %v1291
        %v1293 = vand.u32 %v216, 4294901760
        %v1294 = vsub.f32 %v216, %v1293
        %v1295 = vand.u32 %v1294, 4294901760
        %v1296 = vsub.f32 %v1294, %v1295
        %v1297 = vand.u32 %v1296, 4294901760
        %1298 = vmatpush1.msra.mxu0 %v1297
        %v1299 = vand.u32 %v221, 4294901760
        %v1300 = vsub.f32 %v221, %v1299
        %v1301 = vand.u32 %v1300, 4294901760
        %v1302 = vsub.f32 %v1300, %v1301
        %v1303 = vand.u32 %v1302, 4294901760
        %1304 = vmatprep.subr.mxu0 %v1303
        %v1305 = vand.u32 %v220, 4294901760
        %v1306 = vsub.f32 %v220, %v1305
        %v1307 = vand.u32 %v1306, 4294901760
        %v1308 = vsub.f32 %v1306, %v1307
        %v1309 = vand.u32 %v1308, 4294901760
        %1310 = vmatpush1.msra.mxu0 %v1309
        %v1311 = vand.u32 %v225, 4294901760
        %v1312 = vsub.f32 %v225, %v1311
        %v1313 = vand.u32 %v1312, 4294901760
        %v1314 = vsub.f32 %v1312, %v1313
        %v1315 = vand.u32 %v1314, 4294901760
        %1316 = vmatprep.subr.mxu0 %v1315
        %v1317 = vand.u32 %v224, 4294901760
        %v1318 = vsub.f32 %v224, %v1317
        %v1319 = vand.u32 %v1318, 4294901760
        %v1320 = vsub.f32 %v1318, %v1319
        %v1321 = vand.u32 %v1320, 4294901760
        %1322 = vmatpush1.msra.mxu0 %v1321
        %v1323 = vand.u32 %v229, 4294901760
        %v1324 = vsub.f32 %v229, %v1323
        %v1325 = vand.u32 %v1324, 4294901760
        %v1326 = vsub.f32 %v1324, %v1325
        %v1327 = vand.u32 %v1326, 4294901760
        %1328 = vmatprep.subr.mxu0 %v1327
        %v1329 = vand.u32 %v228, 4294901760
        %v1330 = vsub.f32 %v228, %v1329
        %v1331 = vand.u32 %v1330, 4294901760
        %v1332 = vsub.f32 %v1330, %v1331
        %v1333 = vand.u32 %v1332, 4294901760
        %1334 = vmatpush1.msra.mxu0 %v1333
        %v1335 = vand.u32 %v233, 4294901760
        %v1336 = vsub.f32 %v233, %v1335
        %v1337 = vand.u32 %v1336, 4294901760
        %v1338 = vsub.f32 %v1336, %v1337
        %v1339 = vand.u32 %v1338, 4294901760
        %1340 = vmatprep.subr.mxu0 %v1339
        %v1341 = vand.u32 %v232, 4294901760
        %v1342 = vsub.f32 %v232, %v1341
        %v1343 = vand.u32 %v1342, 4294901760
        %v1344 = vsub.f32 %v1342, %v1343
        %v1345 = vand.u32 %v1344, 4294901760
        %1346 = vmatpush1.msra.mxu0 %v1345
        %v1347 = vand.u32 %v237, 4294901760
        %v1348 = vsub.f32 %v237, %v1347
        %v1349 = vand.u32 %v1348, 4294901760
        %v1350 = vsub.f32 %v1348, %v1349
        %v1351 = vand.u32 %v1350, 4294901760
        %1352 = vmatprep.subr.mxu0 %v1351
        %v1353 = vand.u32 %v236, 4294901760
        %v1354 = vsub.f32 %v236, %v1353
        %v1355 = vand.u32 %v1354, 4294901760
        %v1356 = vsub.f32 %v1354, %v1355
        %v1357 = vand.u32 %v1356, 4294901760
        %1358 = vmatpush1.msra.mxu0 %v1357
        %v1359 = vand.u32 %v241, 4294901760
        %v1360 = vsub.f32 %v241, %v1359
        %v1361 = vand.u32 %v1360, 4294901760
        %v1362 = vsub.f32 %v1360, %v1361
        %v1363 = vand.u32 %v1362, 4294901760
        %1364 = vmatprep.subr.mxu0 %v1363
        %v1365 = vand.u32 %v240, 4294901760
        %v1366 = vsub.f32 %v240, %v1365
        %v1367 = vand.u32 %v1366, 4294901760
        %v1368 = vsub.f32 %v1366, %v1367
        %v1369 = vand.u32 %v1368, 4294901760
        %1370 = vmatpush1.msra.mxu0 %v1369
        %v1371 = vand.u32 %v245, 4294901760
        %v1372 = vsub.f32 %v245, %v1371
        %v1373 = vand.u32 %v1372, 4294901760
        %v1374 = vsub.f32 %v1372, %v1373
        %v1375 = vand.u32 %v1374, 4294901760
        %1376 = vmatprep.subr.mxu0 %v1375
        %v1377 = vand.u32 %v244, 4294901760
        %v1378 = vsub.f32 %v244, %v1377
        %v1379 = vand.u32 %v1378, 4294901760
        %v1380 = vsub.f32 %v1378, %v1379
        %v1381 = vand.u32 %v1380, 4294901760
        %1382 = vmatpush1.msra.mxu0 %v1381
        %v1383 = vand.u32 %v249, 4294901760
        %v1384 = vsub.f32 %v249, %v1383
        %v1385 = vand.u32 %v1384, 4294901760
        %v1386 = vsub.f32 %v1384, %v1385
        %v1387 = vand.u32 %v1386, 4294901760
        %1388 = vmatprep.subr.mxu0 %v1387
        %v1389 = vand.u32 %v248, 4294901760
        %v1390 = vsub.f32 %v248, %v1389
        %v1391 = vand.u32 %v1390, 4294901760
        %v1392 = vsub.f32 %v1390, %v1391
        %v1393 = vand.u32 %v1392, 4294901760
        %1394 = vmatpush1.msra.mxu0 %v1393
        %v1395 = vand.u32 %v253, 4294901760
        %v1396 = vsub.f32 %v253, %v1395
        %v1397 = vand.u32 %v1396, 4294901760
        %v1398 = vsub.f32 %v1396, %v1397
        %v1399 = vand.u32 %v1398, 4294901760
        %1400 = vmatprep.subr.mxu0 %v1399
        %v1401 = vand.u32 %v252, 4294901760
        %v1402 = vsub.f32 %v252, %v1401
        %v1403 = vand.u32 %v1402, 4294901760
        %v1404 = vsub.f32 %v1402, %v1403
        %v1405 = vand.u32 %v1404, 4294901760
        %1406 = vmatpush1.msra.mxu0 %v1405
        %v1407 = vand.u32 %v257, 4294901760
        %v1408 = vsub.f32 %v257, %v1407
        %v1409 = vand.u32 %v1408, 4294901760
        %v1410 = vsub.f32 %v1408, %v1409
        %v1411 = vand.u32 %v1410, 4294901760
        %1412 = vmatprep.subr.mxu0 %v1411
        %v1413 = vand.u32 %v256, 4294901760
        %v1414 = vsub.f32 %v256, %v1413
        %v1415 = vand.u32 %v1414, 4294901760
        %v1416 = vsub.f32 %v1414, %v1415
        %v1417 = vand.u32 %v1416, 4294901760
        %1418 = vmatpush1.msra.mxu0 %v1417
        %v1419 = vand.u32 %v261, 4294901760
        %v1420 = vsub.f32 %v261, %v1419
        %v1421 = vand.u32 %v1420, 4294901760
        %v1422 = vsub.f32 %v1420, %v1421
        %v1423 = vand.u32 %v1422, 4294901760
        %1424 = vmatprep.subr.mxu0 %v1423
        %v1425 = vand.u32 %v260, 4294901760
        %v1426 = vsub.f32 %v260, %v1425
        %v1427 = vand.u32 %v1426, 4294901760
        %v1428 = vsub.f32 %v1426, %v1427
        %v1429 = vand.u32 %v1428, 4294901760
        %1430 = vmatpush1.msra.mxu0 %v1429
        %v1431 = vand.u32 %v265, 4294901760
        %v1432 = vsub.f32 %v265, %v1431
        %v1433 = vand.u32 %v1432, 4294901760
        %v1434 = vsub.f32 %v1432, %v1433
        %v1435 = vand.u32 %v1434, 4294901760
        %1436 = vmatprep.subr.mxu0 %v1435
        %v1437 = vand.u32 %v264, 4294901760
        %v1438 = vsub.f32 %v264, %v1437
        %v1439 = vand.u32 %v1438, 4294901760
        %v1440 = vsub.f32 %v1438, %v1439
        %v1441 = vand.u32 %v1440, 4294901760
        %1442 = vmatpush1.msra.mxu0 %v1441
        %1443 = vmatprep.subr.mxu0 0.0
        %1444 = vmatpush1.msra.mxu0 0.0
        %1445 = vmatprep.subr.mxu0 0.0
        %1446 = vmatpush1.msra.mxu0 0.0
        %1447 = vmatprep.subr.mxu0 0.0
        %1448 = vmatpush1.msra.mxu0 0.0
        %1449 = vmatprep.subr.mxu0 0.0
        %1450 = vmatpush1.msra.mxu0 0.0
        %1451 = vmatprep.subr.mxu0 0.0
        %1452 = vmatpush1.msra.mxu0 0.0
        %1453 = vmatprep.subr.mxu0 0.0
        %1454 = vmatpush1.msra.mxu0 0.0
        %1455 = vmatprep.subr.mxu0 0.0
        %1456 = vmatpush1.msra.mxu0 0.0
        %1457 = vmatprep.subr.mxu0 0.0
        %1458 = vmatpush1.msra.mxu0 0.0
        %1459 = vmatprep.subr.mxu0 0.0
        %1460 = vmatpush1.msra.mxu0 0.0
        %1461 = vmatprep.subr.mxu0 0.0
        %1462 = vmatpush1.msra.mxu0 0.0
        %1463 = vmatprep.subr.mxu0 0.0
        %1464 = vmatpush1.msra.mxu0 0.0
        %1465 = vmatprep.subr.mxu0 0.0
        %1466 = vmatpush1.msra.mxu0 0.0
        %1467 = vmatprep.subr.mxu0 0.0
        %1468 = vmatpush1.msra.mxu0 0.0
        %1469 = vmatprep.subr.mxu0 0.0
        %1470 = vmatpush1.msra.mxu0 0.0
        %1471 = vmatprep.subr.mxu0 0.0
        %1472 = vmatpush1.msra.mxu0 0.0
        %1473 = vmatprep.subr.mxu0 0.0
        %1474 = vmatpush1.msra.mxu0 0.0
        %1475 = vmatprep.mubr.f32.mxu0 0.0
        %v1476 = vand.u32 %v201, 4294901760
        %1477 = vmatmul.mubr.f32.gmra.mrb[0].mxu0 %v1476
        %v1478 = vpop.f32.mrb[0].mxu0
        %v1479 = vadd.f32 %v1247, %v1478
        %v1480 = vpop.f32.mrb[0].mxu0
        %v1481 = vadd.f32 %v1249, %v1480
        %1482 = vdwg.mxu0
        %v1483 = vand.u32 %v205, 4294901760
        %v1484 = vsub.f32 %v205, %v1483
        %1485 = vmatprep.subr.mxu0 %v1484
        %v1486 = vand.u32 %v204, 4294901760
        %v1487 = vsub.f32 %v204, %v1486
        %1488 = vmatpush1.msra.mxu0 %v1487
        %v1489 = vand.u32 %v209, 4294901760
        %v1490 = vsub.f32 %v209, %v1489
        %1491 = vmatprep.subr.mxu0 %v1490
        %v1492 = vand.u32 %v208, 4294901760
        %v1493 = vsub.f32 %v208, %v1492
        %1494 = vmatpush1.msra.mxu0 %v1493
        %v1495 = vand.u32 %v213, 4294901760
        %v1496 = vsub.f32 %v213, %v1495
        %1497 = vmatprep.subr.mxu0 %v1496
        %v1498 = vand.u32 %v212, 4294901760
        %v1499 = vsub.f32 %v212, %v1498
        %1500 = vmatpush1.msra.mxu0 %v1499
        %v1501 = vand.u32 %v217, 4294901760
        %v1502 = vsub.f32 %v217, %v1501
        %1503 = vmatprep.subr.mxu0 %v1502
        %v1504 = vand.u32 %v216, 4294901760
        %v1505 = vsub.f32 %v216, %v1504
        %1506 = vmatpush1.msra.mxu0 %v1505
        %v1507 = vand.u32 %v221, 4294901760
        %v1508 = vsub.f32 %v221, %v1507
        %1509 = vmatprep.subr.mxu0 %v1508
        %v1510 = vand.u32 %v220, 4294901760
        %v1511 = vsub.f32 %v220, %v1510
        %1512 = vmatpush1.msra.mxu0 %v1511
        %v1513 = vand.u32 %v225, 4294901760
        %v1514 = vsub.f32 %v225, %v1513
        %1515 = vmatprep.subr.mxu0 %v1514
        %v1516 = vand.u32 %v224, 4294901760
        %v1517 = vsub.f32 %v224, %v1516
        %1518 = vmatpush1.msra.mxu0 %v1517
        %v1519 = vand.u32 %v229, 4294901760
        %v1520 = vsub.f32 %v229, %v1519
        %1521 = vmatprep.subr.mxu0 %v1520
        %v1522 = vand.u32 %v228, 4294901760
        %v1523 = vsub.f32 %v228, %v1522
        %1524 = vmatpush1.msra.mxu0 %v1523
        %v1525 = vand.u32 %v233, 4294901760
        %v1526 = vsub.f32 %v233, %v1525
        %1527 = vmatprep.subr.mxu0 %v1526
        %v1528 = vand.u32 %v232, 4294901760
        %v1529 = vsub.f32 %v232, %v1528
        %1530 = vmatpush1.msra.mxu0 %v1529
        %v1531 = vand.u32 %v237, 4294901760
        %v1532 = vsub.f32 %v237, %v1531
        %1533 = vmatprep.subr.mxu0 %v1532
        %v1534 = vand.u32 %v236, 4294901760
        %v1535 = vsub.f32 %v236, %v1534
        %1536 = vmatpush1.msra.mxu0 %v1535
        %v1537 = vand.u32 %v241, 4294901760
        %v1538 = vsub.f32 %v241, %v1537
        %1539 = vmatprep.subr.mxu0 %v1538
        %v1540 = vand.u32 %v240, 4294901760
        %v1541 = vsub.f32 %v240, %v1540
        %1542 = vmatpush1.msra.mxu0 %v1541
        %v1543 = vand.u32 %v245, 4294901760
        %v1544 = vsub.f32 %v245, %v1543
        %1545 = vmatprep.subr.mxu0 %v1544
        %v1546 = vand.u32 %v244, 4294901760
        %v1547 = vsub.f32 %v244, %v1546
        %1548 = vmatpush1.msra.mxu0 %v1547
        %v1549 = vand.u32 %v249, 4294901760
        %v1550 = vsub.f32 %v249, %v1549
        %1551 = vmatprep.subr.mxu0 %v1550
        %v1552 = vand.u32 %v248, 4294901760
        %v1553 = vsub.f32 %v248, %v1552
        %1554 = vmatpush1.msra.mxu0 %v1553
        %v1555 = vand.u32 %v253, 4294901760
        %v1556 = vsub.f32 %v253, %v1555
        %1557 = vmatprep.subr.mxu0 %v1556
        %v1558 = vand.u32 %v252, 4294901760
        %v1559 = vsub.f32 %v252, %v1558
        %1560 = vmatpush1.msra.mxu0 %v1559
        %v1561 = vand.u32 %v257, 4294901760
        %v1562 = vsub.f32 %v257, %v1561
        %1563 = vmatprep.subr.mxu0 %v1562
        %v1564 = vand.u32 %v256, 4294901760
        %v1565 = vsub.f32 %v256, %v1564
        %1566 = vmatpush1.msra.mxu0 %v1565
        %v1567 = vand.u32 %v261, 4294901760
        %v1568 = vsub.f32 %v261, %v1567
        %1569 = vmatprep.subr.mxu0 %v1568
        %v1570 = vand.u32 %v260, 4294901760
        %v1571 = vsub.f32 %v260, %v1570
        %1572 = vmatpush1.msra.mxu0 %v1571
        %v1573 = vand.u32 %v265, 4294901760
        %v1574 = vsub.f32 %v265, %v1573
        %1575 = vmatprep.subr.mxu0 %v1574
        %v1576 = vand.u32 %v264, 4294901760
        %v1577 = vsub.f32 %v264, %v1576
        %1578 = vmatpush1.msra.mxu0 %v1577
        %1579 = vmatprep.subr.mxu0 0.0
        %1580 = vmatpush1.msra.mxu0 0.0
        %1581 = vmatprep.subr.mxu0 0.0
        %1582 = vmatpush1.msra.mxu0 0.0
        %1583 = vmatprep.subr.mxu0 0.0
        %1584 = vmatpush1.msra.mxu0 0.0
        %1585 = vmatprep.subr.mxu0 0.0
        %1586 = vmatpush1.msra.mxu0 0.0
        %1587 = vmatprep.subr.mxu0 0.0
        %1588 = vmatpush1.msra.mxu0 0.0
        %1589 = vmatprep.subr.mxu0 0.0
        %1590 = vmatpush1.msra.mxu0 0.0
        %1591 = vmatprep.subr.mxu0 0.0
        %1592 = vmatpush1.msra.mxu0 0.0
        %1593 = vmatprep.subr.mxu0 0.0
        %1594 = vmatpush1.msra.mxu0 0.0
        %1595 = vmatprep.subr.mxu0 0.0
        %1596 = vmatpush1.msra.mxu0 0.0
        %1597 = vmatprep.subr.mxu0 0.0
        %1598 = vmatpush1.msra.mxu0 0.0
        %1599 = vmatprep.subr.mxu0 0.0
        %1600 = vmatpush1.msra.mxu0 0.0
        %1601 = vmatprep.subr.mxu0 0.0
        %1602 = vmatpush1.msra.mxu0 0.0
        %1603 = vmatprep.subr.mxu0 0.0
        %1604 = vmatpush1.msra.mxu0 0.0
        %1605 = vmatprep.subr.mxu0 0.0
        %1606 = vmatpush1.msra.mxu0 0.0
        %1607 = vmatprep.subr.mxu0 0.0
        %1608 = vmatpush1.msra.mxu0 0.0
        %1609 = vmatprep.subr.mxu0 0.0
        %1610 = vmatpush1.msra.mxu0 0.0
        %1611 = vmatprep.mubr.f32.mxu0 0.0
        %v1612 = vand.u32 %v201, 4294901760
        %v1613 = vsub.f32 %v201, %v1612
        %1614 = vmatmul.mubr.f32.gmra.mrb[0].mxu0 %v1613
        %v1615 = vpop.f32.mrb[0].mxu0
        %v1616 = vadd.f32 %v1479, %v1615
        %v1617 = vpop.f32.mrb[0].mxu0
        %v1618 = vadd.f32 %v1481, %v1617
        %1619 = vdwg.mxu0
        %v1620 = vand.u32 %v205, 4294901760
        %1621 = vmatprep.subr.mxu0 %v1620
        %v1622 = vand.u32 %v204, 4294901760
        %1623 = vmatpush1.msra.mxu0 %v1622
        %v1624 = vand.u32 %v209, 4294901760
        %1625 = vmatprep.subr.mxu0 %v1624
        %v1626 = vand.u32 %v208, 4294901760
        %1627 = vmatpush1.msra.mxu0 %v1626
        %v1628 = vand.u32 %v213, 4294901760
        %1629 = vmatprep.subr.mxu0 %v1628
        %v1630 = vand.u32 %v212, 4294901760
        %1631 = vmatpush1.msra.mxu0 %v1630
        %v1632 = vand.u32 %v217, 4294901760
        %1633 = vmatprep.subr.mxu0 %v1632
        %v1634 = vand.u32 %v216, 4294901760
        %1635 = vmatpush1.msra.mxu0 %v1634
        %v1636 = vand.u32 %v221, 4294901760
        %1637 = vmatprep.subr.mxu0 %v1636
        %v1638 = vand.u32 %v220, 4294901760
        %1639 = vmatpush1.msra.mxu0 %v1638
        %v1640 = vand.u32 %v225, 4294901760
        %1641 = vmatprep.subr.mxu0 %v1640
        %v1642 = vand.u32 %v224, 4294901760
        %1643 = vmatpush1.msra.mxu0 %v1642
        %v1644 = vand.u32 %v229, 4294901760
        %1645 = vmatprep.subr.mxu0 %v1644
        %v1646 = vand.u32 %v228, 4294901760
        %1647 = vmatpush1.msra.mxu0 %v1646
        %v1648 = vand.u32 %v233, 4294901760
        %1649 = vmatprep.subr.mxu0 %v1648
        %v1650 = vand.u32 %v232, 4294901760
        %1651 = vmatpush1.msra.mxu0 %v1650
        %v1652 = vand.u32 %v237, 4294901760
        %1653 = vmatprep.subr.mxu0 %v1652
        %v1654 = vand.u32 %v236, 4294901760
        %1655 = vmatpush1.msra.mxu0 %v1654
        %v1656 = vand.u32 %v241, 4294901760
        %1657 = vmatprep.subr.mxu0 %v1656
        %v1658 = vand.u32 %v240, 4294901760
        %1659 = vmatpush1.msra.mxu0 %v1658
        %v1660 = vand.u32 %v245, 4294901760
        %1661 = vmatprep.subr.mxu0 %v1660
        %v1662 = vand.u32 %v244, 4294901760
        %1663 = vmatpush1.msra.mxu0 %v1662
        %v1664 = vand.u32 %v249, 4294901760
        %1665 = vmatprep.subr.mxu0 %v1664
        %v1666 = vand.u32 %v248, 4294901760
        %1667 = vmatpush1.msra.mxu0 %v1666
        %v1668 = vand.u32 %v253, 4294901760
        %1669 = vmatprep.subr.mxu0 %v1668
        %v1670 = vand.u32 %v252, 4294901760
        %1671 = vmatpush1.msra.mxu0 %v1670
        %v1672 = vand.u32 %v257, 4294901760
        %1673 = vmatprep.subr.mxu0 %v1672
        %v1674 = vand.u32 %v256, 4294901760
        %1675 = vmatpush1.msra.mxu0 %v1674
        %v1676 = vand.u32 %v261, 4294901760
        %1677 = vmatprep.subr.mxu0 %v1676
        %v1678 = vand.u32 %v260, 4294901760
        %1679 = vmatpush1.msra.mxu0 %v1678
        %v1680 = vand.u32 %v265, 4294901760
        %1681 = vmatprep.subr.mxu0 %v1680
        %v1682 = vand.u32 %v264, 4294901760
        %1683 = vmatpush1.msra.mxu0 %v1682
        %1684 = vmatprep.subr.mxu0 0.0
        %1685 = vmatpush1.msra.mxu0 0.0
        %1686 = vmatprep.subr.mxu0 0.0
        %1687 = vmatpush1.msra.mxu0 0.0
        %1688 = vmatprep.subr.mxu0 0.0
        %1689 = vmatpush1.msra.mxu0 0.0
        %1690 = vmatprep.subr.mxu0 0.0
        %1691 = vmatpush1.msra.mxu0 0.0
        %1692 = vmatprep.subr.mxu0 0.0
        %1693 = vmatpush1.msra.mxu0 0.0
        %1694 = vmatprep.subr.mxu0 0.0
        %1695 = vmatpush1.msra.mxu0 0.0
        %1696 = vmatprep.subr.mxu0 0.0
        %1697 = vmatpush1.msra.mxu0 0.0
        %1698 = vmatprep.subr.mxu0 0.0
        %1699 = vmatpush1.msra.mxu0 0.0
        %1700 = vmatprep.subr.mxu0 0.0
        %1701 = vmatpush1.msra.mxu0 0.0
        %1702 = vmatprep.subr.mxu0 0.0
        %1703 = vmatpush1.msra.mxu0 0.0
        %1704 = vmatprep.subr.mxu0 0.0
        %1705 = vmatpush1.msra.mxu0 0.0
        %1706 = vmatprep.subr.mxu0 0.0
        %1707 = vmatpush1.msra.mxu0 0.0
        %1708 = vmatprep.subr.mxu0 0.0
        %1709 = vmatpush1.msra.mxu0 0.0
        %1710 = vmatprep.subr.mxu0 0.0
        %1711 = vmatpush1.msra.mxu0 0.0
        %1712 = vmatprep.subr.mxu0 0.0
        %1713 = vmatpush1.msra.mxu0 0.0
        %1714 = vmatprep.subr.mxu0 0.0
        %1715 = vmatpush1.msra.mxu0 0.0
        %1716 = vmatprep.mubr.f32.mxu0 0.0
        %v1717 = vand.u32 %v201, 4294901760
        %v1718 = vsub.f32 %v201, %v1717
        %v1719 = vand.u32 %v1718, 4294901760
        %1720 = vmatmul.mubr.f32.gmra.mrb[0].mxu0 %v1719
        %v1721 = vpop.f32.mrb[0].mxu0
        %v1722 = vadd.f32 %v1616, %v1721
        %v1723 = vpop.f32.mrb[0].mxu0
        %v1724 = vadd.f32 %v1618, %v1723
        %1725 = vdwg.mxu0
        %v1726 = vand.u32 %v205, 4294901760
        %v1727 = vsub.f32 %v205, %v1726
        %v1728 = vand.u32 %v1727, 4294901760
        %1729 = vmatprep.subr.mxu0 %v1728
        %v1730 = vand.u32 %v204, 4294901760
        %v1731 = vsub.f32 %v204, %v1730
        %v1732 = vand.u32 %v1731, 4294901760
        %1733 = vmatpush1.msra.mxu0 %v1732
        %v1734 = vand.u32 %v209, 4294901760
        %v1735 = vsub.f32 %v209, %v1734
        %v1736 = vand.u32 %v1735, 4294901760
        %1737 = vmatprep.subr.mxu0 %v1736
        %v1738 = vand.u32 %v208, 4294901760
        %v1739 = vsub.f32 %v208, %v1738
        %v1740 = vand.u32 %v1739, 4294901760
        %1741 = vmatpush1.msra.mxu0 %v1740
        %v1742 = vand.u32 %v213, 4294901760
        %v1743 = vsub.f32 %v213, %v1742
        %v1744 = vand.u32 %v1743, 4294901760
        %1745 = vmatprep.subr.mxu0 %v1744
        %v1746 = vand.u32 %v212, 4294901760
        %v1747 = vsub.f32 %v212, %v1746
        %v1748 = vand.u32 %v1747, 4294901760
        %1749 = vmatpush1.msra.mxu0 %v1748
        %v1750 = vand.u32 %v217, 4294901760
        %v1751 = vsub.f32 %v217, %v1750
        %v1752 = vand.u32 %v1751, 4294901760
        %1753 = vmatprep.subr.mxu0 %v1752
        %v1754 = vand.u32 %v216, 4294901760
        %v1755 = vsub.f32 %v216, %v1754
        %v1756 = vand.u32 %v1755, 4294901760
        %1757 = vmatpush1.msra.mxu0 %v1756
        %v1758 = vand.u32 %v221, 4294901760
        %v1759 = vsub.f32 %v221, %v1758
        %v1760 = vand.u32 %v1759, 4294901760
        %1761 = vmatprep.subr.mxu0 %v1760
        %v1762 = vand.u32 %v220, 4294901760
        %v1763 = vsub.f32 %v220, %v1762
        %v1764 = vand.u32 %v1763, 4294901760
        %1765 = vmatpush1.msra.mxu0 %v1764
        %v1766 = vand.u32 %v225, 4294901760
        %v1767 = vsub.f32 %v225, %v1766
        %v1768 = vand.u32 %v1767, 4294901760
        %1769 = vmatprep.subr.mxu0 %v1768
        %v1770 = vand.u32 %v224, 4294901760
        %v1771 = vsub.f32 %v224, %v1770
        %v1772 = vand.u32 %v1771, 4294901760
        %1773 = vmatpush1.msra.mxu0 %v1772
        %v1774 = vand.u32 %v229, 4294901760
        %v1775 = vsub.f32 %v229, %v1774
        %v1776 = vand.u32 %v1775, 4294901760
        %1777 = vmatprep.subr.mxu0 %v1776
        %v1778 = vand.u32 %v228, 4294901760
        %v1779 = vsub.f32 %v228, %v1778
        %v1780 = vand.u32 %v1779, 4294901760
        %1781 = vmatpush1.msra.mxu0 %v1780
        %v1782 = vand.u32 %v233, 4294901760
        %v1783 = vsub.f32 %v233, %v1782
        %v1784 = vand.u32 %v1783, 4294901760
        %1785 = vmatprep.subr.mxu0 %v1784
        %v1786 = vand.u32 %v232, 4294901760
        %v1787 = vsub.f32 %v232, %v1786
        %v1788 = vand.u32 %v1787, 4294901760
        %1789 = vmatpush1.msra.mxu0 %v1788
        %v1790 = vand.u32 %v237, 4294901760
        %v1791 = vsub.f32 %v237, %v1790
        %v1792 = vand.u32 %v1791, 4294901760
        %1793 = vmatprep.subr.mxu0 %v1792
        %v1794 = vand.u32 %v236, 4294901760
        %v1795 = vsub.f32 %v236, %v1794
        %v1796 = vand.u32 %v1795, 4294901760
        %1797 = vmatpush1.msra.mxu0 %v1796
        %v1798 = vand.u32 %v241, 4294901760
        %v1799 = vsub.f32 %v241, %v1798
        %v1800 = vand.u32 %v1799, 4294901760
        %1801 = vmatprep.subr.mxu0 %v1800
        %v1802 = vand.u32 %v240, 4294901760
        %v1803 = vsub.f32 %v240, %v1802
        %v1804 = vand.u32 %v1803, 4294901760
        %1805 = vmatpush1.msra.mxu0 %v1804
        %v1806 = vand.u32 %v245, 4294901760
        %v1807 = vsub.f32 %v245, %v1806
        %v1808 = vand.u32 %v1807, 4294901760
        %1809 = vmatprep.subr.mxu0 %v1808
        %v1810 = vand.u32 %v244, 4294901760
        %v1811 = vsub.f32 %v244, %v1810
        %v1812 = vand.u32 %v1811, 4294901760
        %1813 = vmatpush1.msra.mxu0 %v1812
        %v1814 = vand.u32 %v249, 4294901760
        %v1815 = vsub.f32 %v249, %v1814
        %v1816 = vand.u32 %v1815, 4294901760
        %1817 = vmatprep.subr.mxu0 %v1816
        %v1818 = vand.u32 %v248, 4294901760
        %v1819 = vsub.f32 %v248, %v1818
        %v1820 = vand.u32 %v1819, 4294901760
        %1821 = vmatpush1.msra.mxu0 %v1820
        %v1822 = vand.u32 %v253, 4294901760
        %v1823 = vsub.f32 %v253, %v1822
        %v1824 = vand.u32 %v1823, 4294901760
        %1825 = vmatprep.subr.mxu0 %v1824
        %v1826 = vand.u32 %v252, 4294901760
        %v1827 = vsub.f32 %v252, %v1826
        %v1828 = vand.u32 %v1827, 4294901760
        %1829 = vmatpush1.msra.mxu0 %v1828
        %v1830 = vand.u32 %v257, 4294901760
        %v1831 = vsub.f32 %v257, %v1830
        %v1832 = vand.u32 %v1831, 4294901760
        %1833 = vmatprep.subr.mxu0 %v1832
        %v1834 = vand.u32 %v256, 4294901760
        %v1835 = vsub.f32 %v256, %v1834
        %v1836 = vand.u32 %v1835, 4294901760
        %1837 = vmatpush1.msra.mxu0 %v1836
        %v1838 = vand.u32 %v261, 4294901760
        %v1839 = vsub.f32 %v261, %v1838
        %v1840 = vand.u32 %v1839, 4294901760
        %1841 = vmatprep.subr.mxu0 %v1840
        %v1842 = vand.u32 %v260, 4294901760
        %v1843 = vsub.f32 %v260, %v1842
        %v1844 = vand.u32 %v1843, 4294901760
        %1845 = vmatpush1.msra.mxu0 %v1844
        %v1846 = vand.u32 %v265, 4294901760
        %v1847 = vsub.f32 %v265, %v1846
        %v1848 = vand.u32 %v1847, 4294901760
        %1849 = vmatprep.subr.mxu0 %v1848
        %v1850 = vand.u32 %v264, 4294901760
        %v1851 = vsub.f32 %v264, %v1850
        %v1852 = vand.u32 %v1851, 4294901760
        %1853 = vmatpush1.msra.mxu0 %v1852
        %1854 = vmatprep.subr.mxu0 0.0
        %1855 = vmatpush1.msra.mxu0 0.0
        %1856 = vmatprep.subr.mxu0 0.0
        %1857 = vmatpush1.msra.mxu0 0.0
        %1858 = vmatprep.subr.mxu0 0.0
        %1859 = vmatpush1.msra.mxu0 0.0
        %1860 = vmatprep.subr.mxu0 0.0
        %1861 = vmatpush1.msra.mxu0 0.0
        %1862 = vmatprep.subr.mxu0 0.0
        %1863 = vmatpush1.msra.mxu0 0.0
        %1864 = vmatprep.subr.mxu0 0.0
        %1865 = vmatpush1.msra.mxu0 0.0
        %1866 = vmatprep.subr.mxu0 0.0
        %1867 = vmatpush1.msra.mxu0 0.0
        %1868 = vmatprep.subr.mxu0 0.0
        %1869 = vmatpush1.msra.mxu0 0.0
        %1870 = vmatprep.subr.mxu0 0.0
        %1871 = vmatpush1.msra.mxu0 0.0
        %1872 = vmatprep.subr.mxu0 0.0
        %1873 = vmatpush1.msra.mxu0 0.0
        %1874 = vmatprep.subr.mxu0 0.0
        %1875 = vmatpush1.msra.mxu0 0.0
        %1876 = vmatprep.subr.mxu0 0.0
        %1877 = vmatpush1.msra.mxu0 0.0
        %1878 = vmatprep.subr.mxu0 0.0
        %1879 = vmatpush1.msra.mxu0 0.0
        %1880 = vmatprep.subr.mxu0 0.0
        %1881 = vmatpush1.msra.mxu0 0.0
        %1882 = vmatprep.subr.mxu0 0.0
        %1883 = vmatpush1.msra.mxu0 0.0
        %1884 = vmatprep.subr.mxu0 0.0
        %1885 = vmatpush1.msra.mxu0 0.0
        %1886 = vmatprep.mubr.f32.mxu0 0.0
        %v1887 = vand.u32 %v201, 4294901760
        %1888 = vmatmul.mubr.f32.gmra.mrb[0].mxu0 %v1887
        %v1889 = vpop.f32.mrb[0].mxu0
        %v1890 = vadd.f32 %v1722, %v1889
        %v1891 = vpop.f32.mrb[0].mxu0
        %v1892 = vadd.f32 %v1724, %v1891
        %1893 = vdwg.mxu0
        %v1894 = vand.u32 %v205, 4294901760
        %1895 = vmatprep.subr.mxu0 %v1894
        %v1896 = vand.u32 %v204, 4294901760
        %1897 = vmatpush1.msra.mxu0 %v1896
        %v1898 = vand.u32 %v209, 4294901760
        %1899 = vmatprep.subr.mxu0 %v1898
        %v1900 = vand.u32 %v208, 4294901760
        %1901 = vmatpush1.msra.mxu0 %v1900
        %v1902 = vand.u32 %v213, 4294901760
        %1903 = vmatprep.subr.mxu0 %v1902
        %v1904 = vand.u32 %v212, 4294901760
        %1905 = vmatpush1.msra.mxu0 %v1904
        %v1906 = vand.u32 %v217, 4294901760
        %1907 = vmatprep.subr.mxu0 %v1906
        %v1908 = vand.u32 %v216, 4294901760
        %1909 = vmatpush1.msra.mxu0 %v1908
        %v1910 = vand.u32 %v221, 4294901760
        %1911 = vmatprep.subr.mxu0 %v1910
        %v1912 = vand.u32 %v220, 4294901760
        %1913 = vmatpush1.msra.mxu0 %v1912
        %v1914 = vand.u32 %v225, 4294901760
        %1915 = vmatprep.subr.mxu0 %v1914
        %v1916 = vand.u32 %v224, 4294901760
        %1917 = vmatpush1.msra.mxu0 %v1916
        %v1918 = vand.u32 %v229, 4294901760
        %1919 = vmatprep.subr.mxu0 %v1918
        %v1920 = vand.u32 %v228, 4294901760
        %1921 = vmatpush1.msra.mxu0 %v1920
        %v1922 = vand.u32 %v233, 4294901760
        %1923 = vmatprep.subr.mxu0 %v1922
        %v1924 = vand.u32 %v232, 4294901760
        %1925 = vmatpush1.msra.mxu0 %v1924
        %v1926 = vand.u32 %v237, 4294901760
        %1927 = vmatprep.subr.mxu0 %v1926
        %v1928 = vand.u32 %v236, 4294901760
        %1929 = vmatpush1.msra.mxu0 %v1928
        %v1930 = vand.u32 %v241, 4294901760
        %1931 = vmatprep.subr.mxu0 %v1930
        %v1932 = vand.u32 %v240, 4294901760
        %1933 = vmatpush1.msra.mxu0 %v1932
        %v1934 = vand.u32 %v245, 4294901760
        %1935 = vmatprep.subr.mxu0 %v1934
        %v1936 = vand.u32 %v244, 4294901760
        %1937 = vmatpush1.msra.mxu0 %v1936
        %v1938 = vand.u32 %v249, 4294901760
        %1939 = vmatprep.subr.mxu0 %v1938
        %v1940 = vand.u32 %v248, 4294901760
        %1941 = vmatpush1.msra.mxu0 %v1940
        %v1942 = vand.u32 %v253, 4294901760
        %1943 = vmatprep.subr.mxu0 %v1942
        %v1944 = vand.u32 %v252, 4294901760
        %1945 = vmatpush1.msra.mxu0 %v1944
        %v1946 = vand.u32 %v257, 4294901760
        %1947 = vmatprep.subr.mxu0 %v1946
        %v1948 = vand.u32 %v256, 4294901760
        %1949 = vmatpush1.msra.mxu0 %v1948
        %v1950 = vand.u32 %v261, 4294901760
        %1951 = vmatprep.subr.mxu0 %v1950
        %v1952 = vand.u32 %v260, 4294901760
        %1953 = vmatpush1.msra.mxu0 %v1952
        %v1954 = vand.u32 %v265, 4294901760
        %1955 = vmatprep.subr.mxu0 %v1954
        %v1956 = vand.u32 %v264, 4294901760
        %1957 = vmatpush1.msra.mxu0 %v1956
        %1958 = vmatprep.subr.mxu0 0.0
        %1959 = vmatpush1.msra.mxu0 0.0
        %1960 = vmatprep.subr.mxu0 0.0
        %1961 = vmatpush1.msra.mxu0 0.0
        %1962 = vmatprep.subr.mxu0 0.0
        %1963 = vmatpush1.msra.mxu0 0.0
        %1964 = vmatprep.subr.mxu0 0.0
        %1965 = vmatpush1.msra.mxu0 0.0
        %1966 = vmatprep.subr.mxu0 0.0
        %1967 = vmatpush1.msra.mxu0 0.0
        %1968 = vmatprep.subr.mxu0 0.0
        %1969 = vmatpush1.msra.mxu0 0.0
        %1970 = vmatprep.subr.mxu0 0.0
        %1971 = vmatpush1.msra.mxu0 0.0
        %1972 = vmatprep.subr.mxu0 0.0
        %1973 = vmatpush1.msra.mxu0 0.0
        %1974 = vmatprep.subr.mxu0 0.0
        %1975 = vmatpush1.msra.mxu0 0.0
        %1976 = vmatprep.subr.mxu0 0.0
        %1977 = vmatpush1.msra.mxu0 0.0
        %1978 = vmatprep.subr.mxu0 0.0
        %1979 = vmatpush1.msra.mxu0 0.0
        %1980 = vmatprep.subr.mxu0 0.0
        %1981 = vmatpush1.msra.mxu0 0.0
        %1982 = vmatprep.subr.mxu0 0.0
        %1983 = vmatpush1.msra.mxu0 0.0
        %1984 = vmatprep.subr.mxu0 0.0
        %1985 = vmatpush1.msra.mxu0 0.0
        %1986 = vmatprep.subr.mxu0 0.0
        %1987 = vmatpush1.msra.mxu0 0.0
        %1988 = vmatprep.subr.mxu0 0.0
        %1989 = vmatpush1.msra.mxu0 0.0
        %1990 = vmatprep.mubr.f32.mxu0 0.0
        %v1991 = vand.u32 %v201, 4294901760
        %1992 = vmatmul.mubr.f32.gmra.mrb[0].mxu0 %v1991
        %v1993 = vpop.f32.mrb[0].mxu0
        %v1994 = vadd.f32 %v1890, %v1993
        %v1995 = vpop.f32.mrb[0].mxu0
        %v1996 = vadd.f32 %v1892, %v1995
        %1997 = vdwg.mxu0
        %v1998 = vmul.f32 %v1139, 0.5
        %v1999 = vmul.f32 %v1141, 0.5
        %v2000 = vmul.f32 %v1994, 0.5
        %v2001 = vmul.f32 %v1996, 0.5
        %v2002 = vmul.f32 %v1139, 0.70710677
        %v2003 = vmul.f32 %v1141, 0.70710677
        %v2004 = vmul.f32 %v1994, 0.70710677
        %v2005 = vmul.f32 %v1996, 0.70710677
        %v2006 = verf.f32.pop %v2002
        %v2007 = verf.f32.pop %v2003
        %v2008 = verf.f32.pop %v2004
        %v2009 = verf.f32.pop %v2005
        %v2010 = vadd.f32 %v2006, 1.0
        %v2011 = vadd.f32 %v2007, 1.0
        %v2012 = vadd.f32 %v2008, 1.0
        %v2013 = vadd.f32 %v2009, 1.0
        %v2014 = vmul.f32 %v1998, %v2010
        %v2015 = vmul.f32 %v1999, %v2011
        %v2016 = vmul.f32 %v2000, %v2012
        %v2017 = vmul.f32 %v2001, %v2013
        %2018 = vst [vmem:[%s200] sm:$0xff] %v2014
        %2019 = vst [vmem:[%s200 + $0x8] sm:$0xff] %v2015
        %2020 = vst [vmem:[%s200 + $0x10] sm:$0xff] %v2016
        %2021 = vst [vmem:[%s200 + $0x18] sm:$0xff] %v2017
        %s2022 = sand.u32 %s97, 1
        %s2023 = scalar_lea.sflag [#allocation4], %s2022
        %s2024 = sand.u32 %s97, 1
        %s2025 = smul.addr %s2024, 32
        %s2026 = scalar_lea.vmem [#allocation7], %s2025
        // Predicated region
        $region41: #{tpu_custom_call.1} parent=31 // pred_check
          %p2027 = pneg %p107
        $region42: #{tpu_custom_call.1} parent=31 // pred_check_branch
          %2029 = sbr.rel (%p2027) target = $region44
        $region43: #{tpu_custom_call.1} parent=31 // pred_region
          %s2031 = ssub.s32 512, 512
          %2032 = vsyncadd %s2023, %s2031
          %s2033 = smul.addr %s21, 4
          %s2034 = smul.addr %s2033, 128
          %s2035 = scalar_lea.hbm %s3, %s2034
          %s2037 = sshll.u32 %s2026, 4
          %s2038 = int_to_ptr.vmem [resolvable:$true] %s2037
          %2040 = dma.vmem_to_hbm [thread:$0]  %s2038, 512, %s2035, %s2023
        $region44: #{tpu_custom_call.1} parent=31 // pred_fallthru
          _
      $region32: #{tpu_custom_call.1} parent=5 // pred_fallthru
        _
      %p2041 = scmp.le.s32.totalorder 2, %s16
      // Predicated region
      $region45: #{tpu_custom_call.1} parent=5 // pred_check
        %p2042 = pneg %p2041
      $region46: #{tpu_custom_call.1} parent=5 // pred_check_branch
        %2044 = sbr.rel (%p2042) target = $region48
      $region47: #{tpu_custom_call.1} parent=5 // pred_region
        %s2045 = ssub.s32 %s16, 2
        // Predicated region
        $region49: #{tpu_custom_call.1} parent=47 // pred_check
          %p2046 = pneg %p113
        $region50: #{tpu_custom_call.1} parent=47 // pred_check_branch
          %2048 = sbr.rel (%p2046) target = $region52
        $region51: #{tpu_custom_call.1} parent=47 // pred_region
          %s2049 = sand.u32 %s98, 1
          %s2050 = scalar_lea.sflag [#allocation4], %s2049
          %s2051 = sand.u32 %s98, 1
          %s2052 = smul.addr %s2051, 32
          %s2053 = scalar_lea.vmem [#allocation7], %s2052
          %2054 = dma.done %s2050, 512
        $region52: #{tpu_custom_call.1} parent=47 // pred_fallthru
          _
      $region48: #{tpu_custom_call.1} parent=5 // pred_fallthru
        _
    $region6: #{tpu_custom_call.1} parent=1 // loop_footer
      %s20 = sadd.s32 1, %s16
    $region7: #{tpu_custom_call.1} parent=1 // loop_footer_branch
      %15 = sbr.rel target = $region3
    $region8: #{tpu_custom_call.1} parent=1 // loop_exit
      _
    %2055 = vsyncpa [#allocation3], 1
    %s2056 = scalar_lea.sflag [#allocation3], 1
    %2057 = vsyncpa %s2056, 1
    %2058 = vsyncpa [#allocation6], 1
    %2059 = vsyncpa [#allocation4], 1
    %s2060 = scalar_lea.sflag [#allocation4], 1
    %2061 = vsyncpa %s2060, 1

</llo_original>
